<compile_context>
chip_gen: v5e
topology: v5e:2x2
jax: 0.10.0
libtpu: 0.0.40
codegen_flags: <defaults>
</compile_context>

<pallas_src>
import jax
import jax.numpy as jnp
from jax.experimental import pallas as pl
from jax.experimental.pallas import tpu as pltpu  # noqa: F401  (kept for TPU-specific tuning hooks)

# ----------------- small config, consistent with CompPCFG.__init__ ---------------
VOCAB = 128
H_DIM = 64        # LSTM hidden (per direction)
W_DIM = 64        # word embedding dim
Z_DIM = 32
STATE_DIM = 128
T_STATES = 8
NT_STATES = 8
ALL_STATES = T_STATES + NT_STATES
BATCH = 2
SEQ = 8


# ================================ Pallas kernel ==================================
def _log_softmax_lastdim(logits):
    m = jnp.max(logits, axis=-1, keepdims=True)
    shifted = logits - m
    return shifted - jnp.log(jnp.sum(jnp.exp(shifted), axis=-1, keepdims=True))


def _residual_stack(h, wres_ref, bres_ref):
    """Two ResidualLayers: relu(lin2(relu(lin1(h)))) + h.  Weights stacked (4, D, D) bf16."""
    bf = jnp.bfloat16
    f32 = jnp.float32
    for blk in range(2):
        wa = wres_ref[2 * blk]            # (D, D) bf16
        wb = wres_ref[2 * blk + 1]
        ba = bres_ref[2 * blk]            # (1, D) f32
        bb = bres_ref[2 * blk + 1]
        r = jnp.maximum(jnp.dot(h.astype(bf), wa, preferred_element_type=f32) + ba, 0.0)
        h = jnp.maximum(jnp.dot(r.astype(bf), wb, preferred_element_type=f32) + bb, 0.0) + h
    return h


def fused_heads_kernel(
        z_ref, root_emb_ref, t_emb_ref, nt_emb_ref,
        # root head: Linear -> Res -> Res -> Linear(-> NT)
        r_w0s, r_w0z, r_b0, r_wres, r_bres, r_w3, r_b3,
        # vocab head: Linear -> Res -> Res -> Linear(-> VOCAB)
        v_w0s, v_w0z, v_b0, v_wres, v_bres, v_w3, v_b3,
        # rule head: single Linear(-> ALL_STATES**2)
        k_ws, k_wz, k_b,
        root_out, unary_out, rule_out):
    f32 = jnp.float32
    bf = jnp.bfloat16
    B = z_ref.shape[0]
    T = t_emb_ref.shape[0]
    NT = nt_emb_ref.shape[0]
    D = t_emb_ref.shape[1]
    S2 = k_ws.shape[1]

    z_bf = z_ref[...].astype(bf)

    # ---- root head (M = B rows).  z-split first layer: no K=160 concat. ----
    h = (jnp.dot(z_bf, r_w0z[...], preferred_element_type=f32)
         + jnp.dot(root_emb_ref[...].astype(bf), r_w0s[...], preferred_element_type=f32)
         + r_b0[...])
    h = _residual_stack(h, r_wres, r_bres)
    root_out[...] = _log_softmax_lastdim(
        jnp.dot(h.astype(bf), r_w3[...], preferred_element_type=f32) + r_b3[...])

    # ---- vocab head, deduped over positions (M = B*T rows instead of B*n*T). ----
    zv = jnp.dot(z_bf, v_w0z[...], preferred_element_type=f32)                        # (B, D)
    sv = jnp.dot(t_emb_ref[...].astype(bf), v_w0s[...], preferred_element_type=f32)   # (T, D)
    h = (zv[:, None, :] + sv[None, :, :] + v_b0[...]).reshape(B * T, D)
    h = _residual_stack(h, v_wres, v_bres)
    unary_out[...] = _log_softmax_lastdim(
        jnp.dot(h.astype(bf), v_w3[...], preferred_element_type=f32) + v_b3[...])

    # ---- rule head (M = B*NT rows): single linear + log_softmax over S^2. ----
    zk = jnp.dot(z_bf, k_wz[...], preferred_element_type=f32)                         # (B, S2)
    sk = jnp.dot(nt_emb_ref[...].astype(bf), k_ws[...], preferred_element_type=f32)   # (NT, S2)
    rule_out[...] = _log_softmax_lastdim(
        (zk[:, None, :] + sk[None, :, :] + k_b[...]).reshape(B * NT, S2))


def fused_heads(z, root_emb, t_emb, nt_emb, packed):
    """One pallas_call for all three heads.  grid=(): everything (activations and
    all head weights, ~0.5 MB total) stays VMEM-resident for the whole call."""
    B = z.shape[0]
    out_shape = (
        jax.ShapeDtypeStruct((B, NT_STATES), jnp.float32),                    # root log-probs
        jax.ShapeDtypeStruct((B * T_STATES, VOCAB), jnp.float32),             # emission log-probs per (b, T)
        jax.ShapeDtypeStruct((B * NT_STATES, ALL_STATES * ALL_STATES), jnp.float32),
    )
    return pl.pallas_call(fused_heads_kernel, out_shape=out_shape)(
        z, root_emb, t_emb, nt_emb, *packed)


# ================================ parameter setup ================================
def init_params(key):
    ks = iter(jax.random.split(key, 64))
    nk = lambda: next(ks)

    def lin(in_d, out_d):
        # torch layout: weight (out, in), bias (out,)
        w = (jax.random.normal(nk(), (out_d, in_d)) / jnp.sqrt(in_d)).astype(jnp.float32)
        b = (jax.random.normal(nk(), (out_d,)) * 0.01).astype(jnp.float32)
        return w, b

    def head(in_d, out_d):
        return dict(l0=lin(in_d, STATE_DIM),
                    r1a=lin(STATE_DIM, STATE_DIM), r1b=lin(STATE_DIM, STATE_DIM),
                    r2a=lin(STATE_DIM, STATE_DIM), r2b=lin(STATE_DIM, STATE_DIM),
                    l3=lin(STATE_DIM, out_d))

    def lstm_dir():
        return dict(
            w_ih=(jax.random.normal(nk(), (4 * H_DIM, W_DIM)) / jnp.sqrt(H_DIM)).astype(jnp.float32),
            w_hh=(jax.random.normal(nk(), (4 * H_DIM, H_DIM)) / jnp.sqrt(H_DIM)).astype(jnp.float32),
            b_ih=jnp.zeros((4 * H_DIM,), jnp.float32),
            b_hh=jnp.zeros((4 * H_DIM,), jnp.float32))

    p = {}
    p['t_emb'] = jax.random.normal(nk(), (T_STATES, STATE_DIM), jnp.float32)
    p['nt_emb'] = jax.random.normal(nk(), (NT_STATES, STATE_DIM), jnp.float32)
    p['root_emb'] = jax.random.normal(nk(), (1, STATE_DIM), jnp.float32)
    p['rule_mlp'] = lin(STATE_DIM + Z_DIM, ALL_STATES ** 2)
    p['root_mlp'] = head(STATE_DIM + Z_DIM, NT_STATES)
    p['vocab_mlp'] = head(STATE_DIM + Z_DIM, VOCAB)
    p['enc_emb'] = jax.random.normal(nk(), (VOCAB, W_DIM), jnp.float32)
    p['lstm_fwd'] = lstm_dir()
    p['lstm_bwd'] = lstm_dir()
    p['enc_params'] = lin(2 * H_DIM, 2 * Z_DIM)
    return p


def _pack_residual_head(head):
    w0, b0 = head['l0']                 # torch layout: (out, in), (out,)
    w0t = w0.T                          # (STATE_DIM + Z_DIM, STATE_DIM)
    wres = jnp.stack([head[k][0].T for k in ('r1a', 'r1b', 'r2a', 'r2b')])            # (4, D, D)
    bres = jnp.stack([head[k][1].reshape(1, -1) for k in ('r1a', 'r1b', 'r2a', 'r2b')])  # (4, 1, D)
    w3, b3 = head['l3']
    return [w0t[:STATE_DIM].astype(jnp.bfloat16),     # first-layer state part  (D, D)
            w0t[STATE_DIM:].astype(jnp.bfloat16),     # first-layer z part      (Z, D)
            b0.reshape(1, -1),                        # f32
            wres.astype(jnp.bfloat16),
            bres,                                     # f32
            w3.T.astype(jnp.bfloat16),                # (D, out)
            b3.reshape(1, -1)]                        # f32


def prepare_params(raw):
    """One-time packing (called once, outside the forward): transpose to (in, out),
    split the z-concat, stack the residual matrices, cast MXU operands to bf16."""
    wr, br = raw['rule_mlp']
    wrt = wr.T                                        # (STATE_DIM + Z_DIM, ALL_STATES**2)
    packed = (_pack_residual_head(raw['root_mlp'])
              + _pack_residual_head(raw['vocab_mlp'])
              + [wrt[:STATE_DIM].astype(jnp.bfloat16),
                 wrt[STATE_DIM:].astype(jnp.bfloat16),
                 br.reshape(1, -1)])
    p = {k: v for k, v in raw.items() if k not in ('root_mlp', 'vocab_mlp', 'rule_mlp')}
    p['heads_packed'] = packed
    return p


# ================================ encoder (glue) =================================
# TODO(synk): the biLSTM encoder stays in plain JAX (lax.scan); at this size it has
# no worthwhile Pallas formulation.
def lstm_direction(emb, prm, reverse):
    B = emb.shape[0]

    def step(carry, x_t):
        h, c = carry
        gates = x_t @ prm['w_ih'].T + h @ prm['w_hh'].T + prm['b_ih'] + prm['b_hh']
        i, f, g, o = jnp.split(gates, 4, axis=-1)      # torch gate order i|f|g|o
        i = jax.nn.sigmoid(i)
        f = jax.nn.sigmoid(f)
        g = jnp.tanh(g)
        o = jax.nn.sigmoid(o)
        c = f * c + i * g
        h = o * jnp.tanh(c)
        return (h, c), h

    xs = jnp.swapaxes(emb, 0, 1)            # (n, B, W)
    if reverse:
        xs = xs[::-1]
    _, hs = jax.lax.scan(step, (jnp.zeros((B, H_DIM)), jnp.zeros((B, H_DIM))), xs)
    if reverse:
        hs = hs[::-1]
    return jnp.swapaxes(hs, 0, 1)           # (B, n, H)


# ======================== PCFG inside (CKY), width-vectorized ====================
# TODO(synk): PCFG class source was not provided; this is the standard compound-PCFG
# CKY inside recursion (terminals at width-1 spans, binary rules above, root at top),
# vectorized over all spans of a given width (one chart update per width).
def pcfg_inside(unary, rule, root):
    B, n, T = unary.shape
    NT = root.shape[1]
    S = NT + T
    NEG = -1e9
    lse = jax.scipy.special.logsumexp
    beta = jnp.full((B, n, n, S), NEG, jnp.float32)
    diag = jnp.arange(n)
    beta = beta.at[:, diag, diag, NT:].set(unary)
    rule_flat = rule.reshape(B, NT, S * S)
    for w in range(1, n):
        ii = jnp.arange(n - w)                                                # span starts
        ss = jnp.arange(w)                                                    # split offsets
        left = beta[:, ii[:, None], ii[:, None] + ss[None, :], :]             # (B, n-w, w, S)
        right = beta[:, ii[:, None] + ss[None, :] + 1, ii[:, None] + w, :]    # (B, n-w, w, S)
        comb = lse(left[..., :, None] + right[..., None, :], axis=2)          # (B, n-w, S, S)
        score = rule_flat[:, None, :, :] + comb.reshape(B, n - w, 1, S * S)   # (B, n-w, NT, S*S)
        beta = beta.at[:, ii, ii + w, :NT].set(lse(score, axis=-1))
    return lse(root + beta[:, 0, n - 1, :NT], axis=1)


# ================================ CompPCFG forward ===============================
def comp_pcfg_forward(params, x, key, use_mean=True):
    B, n = x.shape
    # --- enc(x): embedding -> biLSTM -> max over time -> linear -> (mean, logvar)
    emb = params['enc_emb'][x]                                      # (B, n, W)
    h = jnp.concatenate([lstm_direction(emb, params['lstm_fwd'], False),
                         lstm_direction(emb, params['lstm_bwd'], True)], axis=-1)
    h_max = jnp.max(h, axis=1)                                      # (B, 2H)
    w_enc, b_enc = params['enc_params']
    enc_out = h_max @ w_enc.T + b_enc                               # (B, 2Z)
    mean, logvar = enc_out[:, :Z_DIM], enc_out[:, Z_DIM:]
    kl = (-0.5 * (logvar - mean ** 2 - jnp.exp(logvar) + 1.0)).sum(1)
    z = jnp.exp(0.5 * logvar) * jax.random.normal(key, mean.shape) + mean
    if use_mean:
        z = mean

    # --- all three score heads in ONE Pallas call (vocab head deduped over n) ---
    root_scores, unary_bt, rule_flat = fused_heads(
        z, params['root_emb'], params['t_emb'], params['nt_emb'], params['heads_packed'])
    unary_bt = unary_bt.reshape(B, T_STATES, VOCAB)                       # (B, T, V)
    rule_scores = rule_flat.reshape(B, NT_STATES, ALL_STATES, ALL_STATES)

    # --- gather emission log-probs of the observed tokens:
    #     unary[b, p, t] = unary_bt[b, t, x[b, p]]
    b_idx = jnp.arange(B)[:, None, None]
    t_idx = jnp.arange(T_STATES)[None, None, :]
    unary = unary_bt[b_idx, t_idx, x[:, :, None].astype(jnp.int32)]        # (B, n, T)

    log_Z = pcfg_inside(unary, rule_scores, root_scores)
    return -log_Z, kl


# ===================================== main ======================================
if __name__ == "__main__":
    key = jax.random.PRNGKey(0)
    pkey, xkey, zkey = jax.random.split(key, 3)
    params = prepare_params(init_params(pkey))        # weights packed ONCE, not per forward
    x = jax.random.randint(xkey, (BATCH, SEQ), 0, VOCAB, dtype=jnp.int32)

    fwd = jax.jit(lambda p, xx, k: comp_pcfg_forward(p, xx, k, use_mean=True))
    neg_log_Z, kl = fwd(params, x, zkey)
    jax.block_until_ready((neg_log_Z, kl))
    assert neg_log_Z.shape == (BATCH,) and kl.shape == (BATCH,)
    assert bool(jnp.all(jnp.isfinite(neg_log_Z))) and bool(jnp.all(jnp.isfinite(kl)))
    print("KERNEL_OK")
</pallas_src>

<mosaic_0001>
module attributes {stable_mosaic.version = 11 : i64} {
  func.func @fused_heads_kernel(%arg0: memref<2x32xf32, #tpu.memory_space<vmem>>, %arg1: memref<1x128xf32, #tpu.memory_space<vmem>>, %arg2: memref<8x128xf32, #tpu.memory_space<vmem>>, %arg3: memref<8x128xf32, #tpu.memory_space<vmem>>, %arg4: memref<128x128xbf16, #tpu.memory_space<vmem>>, %arg5: memref<32x128xbf16, #tpu.memory_space<vmem>>, %arg6: memref<1x128xf32, #tpu.memory_space<vmem>>, %arg7: memref<4x128x128xbf16, #tpu.memory_space<vmem>>, %arg8: memref<4x1x128xf32, #tpu.memory_space<vmem>>, %arg9: memref<128x8xbf16, #tpu.memory_space<vmem>>, %arg10: memref<1x8xf32, #tpu.memory_space<vmem>>, %arg11: memref<128x128xbf16, #tpu.memory_space<vmem>>, %arg12: memref<32x128xbf16, #tpu.memory_space<vmem>>, %arg13: memref<1x128xf32, #tpu.memory_space<vmem>>, %arg14: memref<4x128x128xbf16, #tpu.memory_space<vmem>>, %arg15: memref<4x1x128xf32, #tpu.memory_space<vmem>>, %arg16: memref<128x128xbf16, #tpu.memory_space<vmem>>, %arg17: memref<1x128xf32, #tpu.memory_space<vmem>>, %arg18: memref<128x256xbf16, #tpu.memory_space<vmem>>, %arg19: memref<32x256xbf16, #tpu.memory_space<vmem>>, %arg20: memref<1x256xf32, #tpu.memory_space<vmem>>, %arg21: memref<2x8xf32, #tpu.memory_space<vmem>>, %arg22: memref<16x128xf32, #tpu.memory_space<vmem>>, %arg23: memref<16x256xf32, #tpu.memory_space<vmem>>) attributes {dimension_semantics = [], scalar_prefetch = 0 : i64, scratch_operands = 0 : i64, tpu.core_type = #tpu.core_type<tc>} {
    %c0 = arith.constant 0 : index
    %c0_0 = arith.constant 0 : index
    %0 = vector.load %arg0[%c0, %c0_0] : memref<2x32xf32, #tpu.memory_space<vmem>>, vector<2x32xf32>
    %1 = arith.truncf %0 : vector<2x32xf32> to vector<2x32xbf16>
    %c0_1 = arith.constant 0 : index
    %c0_2 = arith.constant 0 : index
    %2 = vector.load %arg5[%c0_1, %c0_2] : memref<32x128xbf16, #tpu.memory_space<vmem>>, vector<32x128xbf16>
    %cst = arith.constant dense<0.000000e+00> : vector<2x128xf32>
    %3 = tpu.matmul %1, %2, %cst {dimension_numbers = #tpu.dot_dimension_numbers<[1], [0], [0], [1], [0, 0, 1, 1], [], []>} : vector<2x32xbf16>, vector<32x128xbf16>, vector<2x128xf32> -> vector<2x128xf32>
    %c0_3 = arith.constant 0 : index
    %c0_4 = arith.constant 0 : index
    %4 = vector.load %arg1[%c0_3, %c0_4] : memref<1x128xf32, #tpu.memory_space<vmem>>, vector<1x128xf32>
    %5 = arith.truncf %4 : vector<1x128xf32> to vector<1x128xbf16>
    %c0_5 = arith.constant 0 : index
    %c0_6 = arith.constant 0 : index
    %6 = vector.load %arg4[%c0_5, %c0_6] : memref<128x128xbf16, #tpu.memory_space<vmem>>, vector<128x128xbf16>
    %cst_7 = arith.constant dense<0.000000e+00> : vector<1x128xf32>
    %7 = tpu.matmul %5, %6, %cst_7 {dimension_numbers = #tpu.dot_dimension_numbers<[1], [0], [0], [1], [0, 0, 1, 1], [], []>} : vector<1x128xbf16>, vector<128x128xbf16>, vector<1x128xf32> -> vector<1x128xf32>
    %8 = vector.broadcast %7 : vector<1x128xf32> to vector<2x128xf32>
    %9 = arith.addf %3, %8 : vector<2x128xf32>
    %c0_8 = arith.constant 0 : index
    %c0_9 = arith.constant 0 : index
    %10 = vector.load %arg6[%c0_8, %c0_9] : memref<1x128xf32, #tpu.memory_space<vmem>>, vector<1x128xf32>
    %11 = vector.broadcast %10 : vector<1x128xf32> to vector<2x128xf32>
    %12 = arith.addf %9, %11 : vector<2x128xf32>
    %c0_10 = arith.constant 0 : index
    %c0_11 = arith.constant 0 : index
    %c0_12 = arith.constant 0 : index
    %13 = vector.load %arg7[%c0_10, %c0_11, %c0_12] : memref<4x128x128xbf16, #tpu.memory_space<vmem>>, vector<1x128x128xbf16>
    %14 = vector.shape_cast %13 : vector<1x128x128xbf16> to vector<128x128xbf16>
    %c1 = arith.constant 1 : index
    %c0_13 = arith.constant 0 : index
    %c0_14 = arith.constant 0 : index
    %15 = vector.load %arg7[%c1, %c0_13, %c0_14] : memref<4x128x128xbf16, #tpu.memory_space<vmem>>, vector<1x128x128xbf16>
    %16 = vector.shape_cast %15 : vector<1x128x128xbf16> to vector<128x128xbf16>
    %c0_15 = arith.constant 0 : index
    %c0_16 = arith.constant 0 : index
    %c0_17 = arith.constant 0 : index
    %17 = vector.load %arg8[%c0_15, %c0_16, %c0_17] : memref<4x1x128xf32, #tpu.memory_space<vmem>>, vector<1x1x128xf32>
    %18 = vector.shape_cast %17 : vector<1x1x128xf32> to vector<1x128xf32>
    %c1_18 = arith.constant 1 : index
    %c0_19 = arith.constant 0 : index
    %c0_20 = arith.constant 0 : index
    %19 = vector.load %arg8[%c1_18, %c0_19, %c0_20] : memref<4x1x128xf32, #tpu.memory_space<vmem>>, vector<1x1x128xf32>
    %20 = vector.shape_cast %19 : vector<1x1x128xf32> to vector<1x128xf32>
    %21 = arith.truncf %12 : vector<2x128xf32> to vector<2x128xbf16>
    %cst_21 = arith.constant dense<0.000000e+00> : vector<2x128xf32>
    %22 = tpu.matmul %21, %14, %cst_21 {dimension_numbers = #tpu.dot_dimension_numbers<[1], [0], [0], [1], [0, 0, 1, 1], [], []>} : vector<2x128xbf16>, vector<128x128xbf16>, vector<2x128xf32> -> vector<2x128xf32>
    %23 = vector.broadcast %18 : vector<1x128xf32> to vector<2x128xf32>
    %24 = arith.addf %22, %23 : vector<2x128xf32>
    %cst_22 = arith.constant 0.000000e+00 : f32
    %25 = vector.broadcast %cst_22 : f32 to vector<2x128xf32>
    %26 = arith.maximumf %24, %25 : vector<2x128xf32>
    %27 = arith.truncf %26 : vector<2x128xf32> to vector<2x128xbf16>
    %cst_23 = arith.constant dense<0.000000e+00> : vector<2x128xf32>
    %28 = tpu.matmul %27, %16, %cst_23 {dimension_numbers = #tpu.dot_dimension_numbers<[1], [0], [0], [1], [0, 0, 1, 1], [], []>} : vector<2x128xbf16>, vector<128x128xbf16>, vector<2x128xf32> -> vector<2x128xf32>
    %29 = vector.broadcast %20 : vector<1x128xf32> to vector<2x128xf32>
    %30 = arith.addf %28, %29 : vector<2x128xf32>
    %cst_24 = arith.constant 0.000000e+00 : f32
    %31 = vector.broadcast %cst_24 : f32 to vector<2x128xf32>
    %32 = arith.maximumf %30, %31 : vector<2x128xf32>
    %33 = arith.addf %32, %12 : vector<2x128xf32>
    %c2 = arith.constant 2 : index
    %c0_25 = arith.constant 0 : index
    %c0_26 = arith.constant 0 : index
    %34 = vector.load %arg7[%c2, %c0_25, %c0_26] : memref<4x128x128xbf16, #tpu.memory_space<vmem>>, vector<1x128x128xbf16>
    %35 = vector.shape_cast %34 : vector<1x128x128xbf16> to vector<128x128xbf16>
    %c3 = arith.constant 3 : index
    %c0_27 = arith.constant 0 : index
    %c0_28 = arith.constant 0 : index
    %36 = vector.load %arg7[%c3, %c0_27, %c0_28] : memref<4x128x128xbf16, #tpu.memory_space<vmem>>, vector<1x128x128xbf16>
    %37 = vector.shape_cast %36 : vector<1x128x128xbf16> to vector<128x128xbf16>
    %c2_29 = arith.constant 2 : index
    %c0_30 = arith.constant 0 : index
    %c0_31 = arith.constant 0 : index
    %38 = vector.load %arg8[%c2_29, %c0_30, %c0_31] : memref<4x1x128xf32, #tpu.memory_space<vmem>>, vector<1x1x128xf32>
    %39 = vector.shape_cast %38 : vector<1x1x128xf32> to vector<1x128xf32>
    %c3_32 = arith.constant 3 : index
    %c0_33 = arith.constant 0 : index
    %c0_34 = arith.constant 0 : index
    %40 = vector.load %arg8[%c3_32, %c0_33, %c0_34] : memref<4x1x128xf32, #tpu.memory_space<vmem>>, vector<1x1x128xf32>
    %41 = vector.shape_cast %40 : vector<1x1x128xf32> to vector<1x128xf32>
    %42 = arith.truncf %33 : vector<2x128xf32> to vector<2x128xbf16>
    %cst_35 = arith.constant dense<0.000000e+00> : vector<2x128xf32>
    %43 = tpu.matmul %42, %35, %cst_35 {dimension_numbers = #tpu.dot_dimension_numbers<[1], [0], [0], [1], [0, 0, 1, 1], [], []>} : vector<2x128xbf16>, vector<128x128xbf16>, vector<2x128xf32> -> vector<2x128xf32>
    %44 = vector.broadcast %39 : vector<1x128xf32> to vector<2x128xf32>
    %45 = arith.addf %43, %44 : vector<2x128xf32>
    %cst_36 = arith.constant 0.000000e+00 : f32
    %46 = vector.broadcast %cst_36 : f32 to vector<2x128xf32>
    %47 = arith.maximumf %45, %46 : vector<2x128xf32>
    %48 = arith.truncf %47 : vector<2x128xf32> to vector<2x128xbf16>
    %cst_37 = arith.constant dense<0.000000e+00> : vector<2x128xf32>
    %49 = tpu.matmul %48, %37, %cst_37 {dimension_numbers = #tpu.dot_dimension_numbers<[1], [0], [0], [1], [0, 0, 1, 1], [], []>} : vector<2x128xbf16>, vector<128x128xbf16>, vector<2x128xf32> -> vector<2x128xf32>
    %50 = vector.broadcast %41 : vector<1x128xf32> to vector<2x128xf32>
    %51 = arith.addf %49, %50 : vector<2x128xf32>
    %cst_38 = arith.constant 0.000000e+00 : f32
    %52 = vector.broadcast %cst_38 : f32 to vector<2x128xf32>
    %53 = arith.maximumf %51, %52 : vector<2x128xf32>
    %54 = arith.addf %53, %33 : vector<2x128xf32>
    %55 = arith.truncf %54 : vector<2x128xf32> to vector<2x128xbf16>
    %c0_39 = arith.constant 0 : index
    %c0_40 = arith.constant 0 : index
    %56 = vector.load %arg9[%c0_39, %c0_40] : memref<128x8xbf16, #tpu.memory_space<vmem>>, vector<128x8xbf16>
    %cst_41 = arith.constant dense<0.000000e+00> : vector<2x8xf32>
    %57 = tpu.matmul %55, %56, %cst_41 {dimension_numbers = #tpu.dot_dimension_numbers<[1], [0], [0], [1], [0, 0, 1, 1], [], []>} : vector<2x128xbf16>, vector<128x8xbf16>, vector<2x8xf32> -> vector<2x8xf32>
    %c0_42 = arith.constant 0 : index
    %c0_43 = arith.constant 0 : index
    %58 = vector.load %arg10[%c0_42, %c0_43] : memref<1x8xf32, #tpu.memory_space<vmem>>, vector<1x8xf32>
    %59 = vector.broadcast %58 : vector<1x8xf32> to vector<2x8xf32>
    %60 = arith.addf %57, %59 : vector<2x8xf32>
    %cst_44 = arith.constant dense<0xFF800000> : vector<2xf32>
    %61 = vector.multi_reduction <maximumf>, %60, %cst_44 [1] : vector<2x8xf32> to vector<2xf32>
    %62 = vector.shape_cast %61 : vector<2xf32> to vector<2x1xf32>
    %63 = vector.broadcast %62 : vector<2x1xf32> to vector<2x8xf32>
    %64 = arith.subf %60, %63 : vector<2x8xf32>
    %65 = math.exp %64 : vector<2x8xf32>
    %cst_45 = arith.constant dense<0.000000e+00> : vector<2xf32>
    %66 = vector.multi_reduction <add>, %65, %cst_45 [1] : vector<2x8xf32> to vector<2xf32>
    %67 = vector.shape_cast %66 : vector<2xf32> to vector<2x1xf32>
    %68 = math.log %67 : vector<2x1xf32>
    %69 = vector.broadcast %68 : vector<2x1xf32> to vector<2x8xf32>
    %70 = arith.subf %64, %69 : vector<2x8xf32>
    %c0_46 = arith.constant 0 : index
    %c0_47 = arith.constant 0 : index
    %71 = vector.load %arg21[%c0_46, %c0_47] : memref<2x8xf32, #tpu.memory_space<vmem>>, vector<2x8xf32>
    tpu.vector_store %arg21[%c0_46, %c0_47], %70 {strides = array<i32>} : memref<2x8xf32, #tpu.memory_space<vmem>>, vector<2x8xf32>,
    %c0_48 = arith.constant 0 : index
    %c0_49 = arith.constant 0 : index
    %72 = vector.load %arg12[%c0_48, %c0_49] : memref<32x128xbf16, #tpu.memory_space<vmem>>, vector<32x128xbf16>
    %cst_50 = arith.constant dense<0.000000e+00> : vector<2x128xf32>
    %73 = tpu.matmul %1, %72, %cst_50 {dimension_numbers = #tpu.dot_dimension_numbers<[1], [0], [0], [1], [0, 0, 1, 1], [], []>} : vector<2x32xbf16>, vector<32x128xbf16>, vector<2x128xf32> -> vector<2x128xf32>
    %c0_51 = arith.constant 0 : index
    %c0_52 = arith.constant 0 : index
    %74 = vector.load %arg2[%c0_51, %c0_52] : memref<8x128xf32, #tpu.memory_space<vmem>>, vector<8x128xf32>
    %75 = arith.truncf %74 : vector<8x128xf32> to vector<8x128xbf16>
    %c0_53 = arith.constant 0 : index
    %c0_54 = arith.constant 0 : index
    %76 = vector.load %arg11[%c0_53, %c0_54] : memref<128x128xbf16, #tpu.memory_space<vmem>>, vector<128x128xbf16>
    %cst_55 = arith.constant dense<0.000000e+00> : vector<8x128xf32>
    %77 = tpu.matmul %75, %76, %cst_55 {dimension_numbers = #tpu.dot_dimension_numbers<[1], [0], [0], [1], [0, 0, 1, 1], [], []>} : vector<8x128xbf16>, vector<128x128xbf16>, vector<8x128xf32> -> vector<8x128xf32>
    %78 = vector.shape_cast %73 : vector<2x128xf32> to vector<2x1x128xf32>
    %79 = vector.shape_cast %77 : vector<8x128xf32> to vector<1x8x128xf32>
    %80 = vector.broadcast %78 : vector<2x1x128xf32> to vector<2x8x128xf32>
    %81 = vector.broadcast %79 : vector<1x8x128xf32> to vector<2x8x128xf32>
    %82 = arith.addf %80, %81 : vector<2x8x128xf32>
    %c0_56 = arith.constant 0 : index
    %c0_57 = arith.constant 0 : index
    %83 = vector.load %arg13[%c0_56, %c0_57] : memref<1x128xf32, #tpu.memory_space<vmem>>, vector<1x128xf32>
    %84 = vector.shape_cast %83 : vector<1x128xf32> to vector<1x1x128xf32>
    %85 = vector.broadcast %84 : vector<1x1x128xf32> to vector<2x8x128xf32>
    %86 = arith.addf %82, %85 : vector<2x8x128xf32>
    %87 = vector.shape_cast %86 : vector<2x8x128xf32> to vector<16x128xf32>
    %c0_58 = arith.constant 0 : index
    %c0_59 = arith.constant 0 : index
    %c0_60 = arith.constant 0 : index
    %88 = vector.load %arg14[%c0_58, %c0_59, %c0_60] : memref<4x128x128xbf16, #tpu.memory_space<vmem>>, vector<1x128x128xbf16>
    %89 = vector.shape_cast %88 : vector<1x128x128xbf16> to vector<128x128xbf16>
    %c1_61 = arith.constant 1 : index
    %c0_62 = arith.constant 0 : index
    %c0_63 = arith.constant 0 : index
    %90 = vector.load %arg14[%c1_61, %c0_62, %c0_63] : memref<4x128x128xbf16, #tpu.memory_space<vmem>>, vector<1x128x128xbf16>
    %91 = vector.shape_cast %90 : vector<1x128x128xbf16> to vector<128x128xbf16>
    %c0_64 = arith.constant 0 : index
    %c0_65 = arith.constant 0 : index
    %c0_66 = arith.constant 0 : index
    %92 = vector.load %arg15[%c0_64, %c0_65, %c0_66] : memref<4x1x128xf32, #tpu.memory_space<vmem>>, vector<1x1x128xf32>
    %93 = vector.shape_cast %92 : vector<1x1x128xf32> to vector<1x128xf32>
    %c1_67 = arith.constant 1 : index
    %c0_68 = arith.constant 0 : index
    %c0_69 = arith.constant 0 : index
    %94 = vector.load %arg15[%c1_67, %c0_68, %c0_69] : memref<4x1x128xf32, #tpu.memory_space<vmem>>, vector<1x1x128xf32>
    %95 = vector.shape_cast %94 : vector<1x1x128xf32> to vector<1x128xf32>
    %96 = arith.truncf %87 : vector<16x128xf32> to vector<16x128xbf16>
    %cst_70 = arith.constant dense<0.000000e+00> : vector<16x128xf32>
    %97 = tpu.matmul %96, %89, %cst_70 {dimension_numbers = #tpu.dot_dimension_numbers<[1], [0], [0], [1], [0, 0, 1, 1], [], []>} : vector<16x128xbf16>, vector<128x128xbf16>, vector<16x128xf32> -> vector<16x128xf32>
    %98 = vector.broadcast %93 : vector<1x128xf32> to vector<16x128xf32>
    %99 = arith.addf %97, %98 : vector<16x128xf32>
    %cst_71 = arith.constant 0.000000e+00 : f32
    %100 = vector.broadcast %cst_71 : f32 to vector<16x128xf32>
    %101 = arith.maximumf %99, %100 : vector<16x128xf32>
    %102 = arith.truncf %101 : vector<16x128xf32> to vector<16x128xbf16>
    %cst_72 = arith.constant dense<0.000000e+00> : vector<16x128xf32>
    %103 = tpu.matmul %102, %91, %cst_72 {dimension_numbers = #tpu.dot_dimension_numbers<[1], [0], [0], [1], [0, 0, 1, 1], [], []>} : vector<16x128xbf16>, vector<128x128xbf16>, vector<16x128xf32> -> vector<16x128xf32>
    %104 = vector.broadcast %95 : vector<1x128xf32> to vector<16x128xf32>
    %105 = arith.addf %103, %104 : vector<16x128xf32>
    %cst_73 = arith.constant 0.000000e+00 : f32
    %106 = vector.broadcast %cst_73 : f32 to vector<16x128xf32>
    %107 = arith.maximumf %105, %106 : vector<16x128xf32>
    %108 = arith.addf %107, %87 : vector<16x128xf32>
    %c2_74 = arith.constant 2 : index
    %c0_75 = arith.constant 0 : index
    %c0_76 = arith.constant 0 : index
    %109 = vector.load %arg14[%c2_74, %c0_75, %c0_76] : memref<4x128x128xbf16, #tpu.memory_space<vmem>>, vector<1x128x128xbf16>
    %110 = vector.shape_cast %109 : vector<1x128x128xbf16> to vector<128x128xbf16>
    %c3_77 = arith.constant 3 : index
    %c0_78 = arith.constant 0 : index
    %c0_79 = arith.constant 0 : index
    %111 = vector.load %arg14[%c3_77, %c0_78, %c0_79] : memref<4x128x128xbf16, #tpu.memory_space<vmem>>, vector<1x128x128xbf16>
    %112 = vector.shape_cast %111 : vector<1x128x128xbf16> to vector<128x128xbf16>
    %c2_80 = arith.constant 2 : index
    %c0_81 = arith.constant 0 : index
    %c0_82 = arith.constant 0 : index
    %113 = vector.load %arg15[%c2_80, %c0_81, %c0_82] : memref<4x1x128xf32, #tpu.memory_space<vmem>>, vector<1x1x128xf32>
    %114 = vector.shape_cast %113 : vector<1x1x128xf32> to vector<1x128xf32>
    %c3_83 = arith.constant 3 : index
    %c0_84 = arith.constant 0 : index
    %c0_85 = arith.constant 0 : index
    %115 = vector.load %arg15[%c3_83, %c0_84, %c0_85] : memref<4x1x128xf32, #tpu.memory_space<vmem>>, vector<1x1x128xf32>
    %116 = vector.shape_cast %115 : vector<1x1x128xf32> to vector<1x128xf32>
    %117 = arith.truncf %108 : vector<16x128xf32> to vector<16x128xbf16>
    %cst_86 = arith.constant dense<0.000000e+00> : vector<16x128xf32>
    %118 = tpu.matmul %117, %110, %cst_86 {dimension_numbers = #tpu.dot_dimension_numbers<[1], [0], [0], [1], [0, 0, 1, 1], [], []>} : vector<16x128xbf16>, vector<128x128xbf16>, vector<16x128xf32> -> vector<16x128xf32>
    %119 = vector.broadcast %114 : vector<1x128xf32> to vector<16x128xf32>
    %120 = arith.addf %118, %119 : vector<16x128xf32>
    %cst_87 = arith.constant 0.000000e+00 : f32
    %121 = vector.broadcast %cst_87 : f32 to vector<16x128xf32>
    %122 = arith.maximumf %120, %121 : vector<16x128xf32>
    %123 = arith.truncf %122 : vector<16x128xf32> to vector<16x128xbf16>
    %cst_88 = arith.constant dense<0.000000e+00> : vector<16x128xf32>
    %124 = tpu.matmul %123, %112, %cst_88 {dimension_numbers = #tpu.dot_dimension_numbers<[1], [0], [0], [1], [0, 0, 1, 1], [], []>} : vector<16x128xbf16>, vector<128x128xbf16>, vector<16x128xf32> -> vector<16x128xf32>
    %125 = vector.broadcast %116 : vector<1x128xf32> to vector<16x128xf32>
    %126 = arith.addf %124, %125 : vector<16x128xf32>
    %cst_89 = arith.constant 0.000000e+00 : f32
    %127 = vector.broadcast %cst_89 : f32 to vector<16x128xf32>
    %128 = arith.maximumf %126, %127 : vector<16x128xf32>
    %129 = arith.addf %128, %108 : vector<16x128xf32>
    %130 = arith.truncf %129 : vector<16x128xf32> to vector<16x128xbf16>
    %c0_90 = arith.constant 0 : index
    %c0_91 = arith.constant 0 : index
    %131 = vector.load %arg16[%c0_90, %c0_91] : memref<128x128xbf16, #tpu.memory_space<vmem>>, vector<128x128xbf16>
    %cst_92 = arith.constant dense<0.000000e+00> : vector<16x128xf32>
    %132 = tpu.matmul %130, %131, %cst_92 {dimension_numbers = #tpu.dot_dimension_numbers<[1], [0], [0], [1], [0, 0, 1, 1], [], []>} : vector<16x128xbf16>, vector<128x128xbf16>, vector<16x128xf32> -> vector<16x128xf32>
    %c0_93 = arith.constant 0 : index
    %c0_94 = arith.constant 0 : index
    %133 = vector.load %arg17[%c0_93, %c0_94] : memref<1x128xf32, #tpu.memory_space<vmem>>, vector<1x128xf32>
    %134 = vector.broadcast %133 : vector<1x128xf32> to vector<16x128xf32>
    %135 = arith.addf %132, %134 : vector<16x128xf32>
    %cst_95 = arith.constant dense<0xFF800000> : vector<16xf32>
    %136 = vector.multi_reduction <maximumf>, %135, %cst_95 [1] : vector<16x128xf32> to vector<16xf32>
    %137 = vector.shape_cast %136 : vector<16xf32> to vector<16x1xf32>
    %138 = vector.broadcast %137 : vector<16x1xf32> to vector<16x128xf32>
    %139 = arith.subf %135, %138 : vector<16x128xf32>
    %140 = math.exp %139 : vector<16x128xf32>
    %cst_96 = arith.constant dense<0.000000e+00> : vector<16xf32>
    %141 = vector.multi_reduction <add>, %140, %cst_96 [1] : vector<16x128xf32> to vector<16xf32>
    %142 = vector.shape_cast %141 : vector<16xf32> to vector<16x1xf32>
    %143 = math.log %142 : vector<16x1xf32>
    %144 = vector.broadcast %143 : vector<16x1xf32> to vector<16x128xf32>
    %145 = arith.subf %139, %144 : vector<16x128xf32>
    %c0_97 = arith.constant 0 : index
    %c0_98 = arith.constant 0 : index
    %146 = vector.load %arg22[%c0_97, %c0_98] : memref<16x128xf32, #tpu.memory_space<vmem>>, vector<16x128xf32>
    tpu.vector_store %arg22[%c0_97, %c0_98], %145 {strides = array<i32>} : memref<16x128xf32, #tpu.memory_space<vmem>>, vector<16x128xf32>,
    %c0_99 = arith.constant 0 : index
    %c0_100 = arith.constant 0 : index
    %147 = vector.load %arg19[%c0_99, %c0_100] : memref<32x256xbf16, #tpu.memory_space<vmem>>, vector<32x256xbf16>
    %cst_101 = arith.constant dense<0.000000e+00> : vector<2x256xf32>
    %148 = tpu.matmul %1, %147, %cst_101 {dimension_numbers = #tpu.dot_dimension_numbers<[1], [0], [0], [1], [0, 0, 1, 1], [], []>} : vector<2x32xbf16>, vector<32x256xbf16>, vector<2x256xf32> -> vector<2x256xf32>
    %c0_102 = arith.constant 0 : index
    %c0_103 = arith.constant 0 : index
    %149 = vector.load %arg3[%c0_102, %c0_103] : memref<8x128xf32, #tpu.memory_space<vmem>>, vector<8x128xf32>
    %150 = arith.truncf %149 : vector<8x128xf32> to vector<8x128xbf16>
    %c0_104 = arith.constant 0 : index
    %c0_105 = arith.constant 0 : index
    %151 = vector.load %arg18[%c0_104, %c0_105] : memref<128x256xbf16, #tpu.memory_space<vmem>>, vector<128x256xbf16>
    %cst_106 = arith.constant dense<0.000000e+00> : vector<8x256xf32>
    %152 = tpu.matmul %150, %151, %cst_106 {dimension_numbers = #tpu.dot_dimension_numbers<[1], [0], [0], [1], [0, 0, 1, 1], [], []>} : vector<8x128xbf16>, vector<128x256xbf16>, vector<8x256xf32> -> vector<8x256xf32>
    %153 = vector.shape_cast %148 : vector<2x256xf32> to vector<2x1x256xf32>
    %154 = vector.shape_cast %152 : vector<8x256xf32> to vector<1x8x256xf32>
    %155 = vector.broadcast %153 : vector<2x1x256xf32> to vector<2x8x256xf32>
    %156 = vector.broadcast %154 : vector<1x8x256xf32> to vector<2x8x256xf32>
    %157 = arith.addf %155, %156 : vector<2x8x256xf32>
    %c0_107 = arith.constant 0 : index
    %c0_108 = arith.constant 0 : index
    %158 = vector.load %arg20[%c0_107, %c0_108] : memref<1x256xf32, #tpu.memory_space<vmem>>, vector<1x256xf32>
    %159 = vector.shape_cast %158 : vector<1x256xf32> to vector<1x1x256xf32>
    %160 = vector.broadcast %159 : vector<1x1x256xf32> to vector<2x8x256xf32>
    %161 = arith.addf %157, %160 : vector<2x8x256xf32>
    %162 = vector.shape_cast %161 : vector<2x8x256xf32> to vector<16x256xf32>
    %cst_109 = arith.constant dense<0xFF800000> : vector<16xf32>
    %163 = vector.multi_reduction <maximumf>, %162, %cst_109 [1] : vector<16x256xf32> to vector<16xf32>
    %164 = vector.shape_cast %163 : vector<16xf32> to vector<16x1xf32>
    %165 = vector.broadcast %164 : vector<16x1xf32> to vector<16x256xf32>
    %166 = arith.subf %162, %165 : vector<16x256xf32>
    %167 = math.exp %166 : vector<16x256xf32>
    %cst_110 = arith.constant dense<0.000000e+00> : vector<16xf32>
    %168 = vector.multi_reduction <add>, %167, %cst_110 [1] : vector<16x256xf32> to vector<16xf32>
    %169 = vector.shape_cast %168 : vector<16xf32> to vector<16x1xf32>
    %170 = math.log %169 : vector<16x1xf32>
    %171 = vector.broadcast %170 : vector<16x1xf32> to vector<16x256xf32>
    %172 = arith.subf %166, %171 : vector<16x256xf32>
    %c0_111 = arith.constant 0 : index
    %c0_112 = arith.constant 0 : index
    %173 = vector.load %arg23[%c0_111, %c0_112] : memref<16x256xf32, #tpu.memory_space<vmem>>, vector<16x256xf32>
    tpu.vector_store %arg23[%c0_111, %c0_112], %172 {strides = array<i32>} : memref<16x256xf32, #tpu.memory_space<vmem>>, vector<16x256xf32>,
    return
  }
}

</mosaic_0001>

<llo_original>
// kernel: custom-call.33
$region0: #{custom-call.33}
  %s0 = inlined_call_operand.vmem [shape: f32[2,64], index: 0, kind: output, shape index: {}]

// kernel: custom-call.32
$region0: #{custom-call.32}
  %s0 = inlined_call_operand.vmem [shape: bf16[2,64], index: 0, kind: output, shape index: {}]

// kernel: _lambda_.1
$region0: #{_lambda_.1}
  #allocation0 [shape = 'u32[]', space=smem, size = 0x4, offset = 0x4, fixed_abs, tag = 'smem constant byte address 0x4 - core index']
  #allocation1 [shape = 'u32[72,128]{1,0:T(1,128)}', space=vmem, size = 0x9000, scoped, tag = 'internal scratch']
  %s0 = inlined_call_operand.vmem [shape: f32[2,32], index: 0, kind: input, shape index: {}]
  %s1 = inlined_call_operand.vmem [shape: f32[1,128], index: 1, kind: input, shape index: {}]
  %s2 = inlined_call_operand.vmem [shape: f32[8,128], index: 2, kind: input, shape index: {}]
  %s3 = inlined_call_operand.vmem [shape: f32[8,128], index: 3, kind: input, shape index: {}]
  %s4 = inlined_call_operand.vmem [shape: bf16[128,128], index: 4, kind: input, shape index: {}]
  %s5 = inlined_call_operand.vmem [shape: bf16[32,128], index: 5, kind: input, shape index: {}]
  %s6 = inlined_call_operand.vmem [shape: f32[1,128], index: 6, kind: input, shape index: {}]
  %s7 = inlined_call_operand.vmem [shape: bf16[4,128,128], index: 7, kind: input, shape index: {}]
  %s8 = inlined_call_operand.vmem [shape: f32[4,1,128], index: 8, kind: input, shape index: {}]
  %s9 = inlined_call_operand.vmem [shape: bf16[128,8], index: 9, kind: input, shape index: {}]
  %s10 = inlined_call_operand.vmem [shape: f32[1,8], index: 10, kind: input, shape index: {}]
  %s11 = inlined_call_operand.vmem [shape: bf16[128,128], index: 11, kind: input, shape index: {}]
  %s12 = inlined_call_operand.vmem [shape: bf16[32,128], index: 12, kind: input, shape index: {}]
  %s13 = inlined_call_operand.vmem [shape: f32[1,128], index: 13, kind: input, shape index: {}]
  %s14 = inlined_call_operand.vmem [shape: bf16[4,128,128], index: 14, kind: input, shape index: {}]
  %s15 = inlined_call_operand.vmem [shape: f32[4,1,128], index: 15, kind: input, shape index: {}]
  %s16 = inlined_call_operand.vmem [shape: bf16[128,128], index: 16, kind: input, shape index: {}]
  %s17 = inlined_call_operand.vmem [shape: f32[1,128], index: 17, kind: input, shape index: {}]
  %s18 = inlined_call_operand.vmem [shape: bf16[128,256], index: 18, kind: input, shape index: {}]
  %s19 = inlined_call_operand.vmem [shape: bf16[32,256], index: 19, kind: input, shape index: {}]
  %s20 = inlined_call_operand.vmem [shape: f32[1,256], index: 20, kind: input, shape index: {}]
  %s21 = inlined_call_operand.vmem [shape: f32[2,8], index: 21, kind: output, shape index: {0}]
  %s22 = inlined_call_operand.vmem [shape: f32[16,128], index: 22, kind: output, shape index: {1}]
  %s23 = inlined_call_operand.vmem [shape: f32[16,256], index: 23, kind: output, shape index: {2}]
  %24 = xla_tuple %s21, %s22, %s23
  %s25 = sld [smem:[#allocation0]]
  $region110: #{_lambda_.1} parent=0
    _
  %s27 = ssub.s32 1, %s25
  %s28 = scalar_select 0, %s27, %s25
  // Predicated region
  $region2: #{_lambda_.1} parent=0 // pred_check
    _
  $region3: #{_lambda_.1} parent=0 // pred_check_branch
    %30 = sbr.rel (0) target = $region5
  $region4: #{_lambda_.1} parent=0 // pred_region
    _
  $region5: #{_lambda_.1} parent=0 // pred_fallthru
    _
  // Predicated region
  $region6: #{_lambda_.1} parent=0 // pred_check
    _
  $region7: #{_lambda_.1} parent=0 // pred_check_branch
    %32 = sbr.rel (0) target = $region9
  $region8: #{_lambda_.1} parent=0 // pred_region
    _
  $region9: #{_lambda_.1} parent=0 // pred_fallthru
    _
  // Predicated region
  $region10: #{_lambda_.1} parent=0 // pred_check
    _
  $region11: #{_lambda_.1} parent=0 // pred_check_branch
    %34 = sbr.rel (0) target = $region13
  $region12: #{_lambda_.1} parent=0 // pred_region
    _
  $region13: #{_lambda_.1} parent=0 // pred_fallthru
    _
  // Predicated region
  $region14: #{_lambda_.1} parent=0 // pred_check
    _
  $region15: #{_lambda_.1} parent=0 // pred_check_branch
    %36 = sbr.rel (0) target = $region17
  $region16: #{_lambda_.1} parent=0 // pred_region
    _
  $region17: #{_lambda_.1} parent=0 // pred_fallthru
    _
  // Predicated region
  $region18: #{_lambda_.1} parent=0 // pred_check
    _
  $region19: #{_lambda_.1} parent=0 // pred_check_branch
    %38 = sbr.rel (0) target = $region21
  $region20: #{_lambda_.1} parent=0 // pred_region
    _
  $region21: #{_lambda_.1} parent=0 // pred_fallthru
    _
  // Predicated region
  $region22: #{_lambda_.1} parent=0 // pred_check
    _
  $region23: #{_lambda_.1} parent=0 // pred_check_branch
    %40 = sbr.rel (0) target = $region25
  $region24: #{_lambda_.1} parent=0 // pred_region
    _
  $region25: #{_lambda_.1} parent=0 // pred_fallthru
    _
  // Predicated region
  $region26: #{_lambda_.1} parent=0 // pred_check
    _
  $region27: #{_lambda_.1} parent=0 // pred_check_branch
    %42 = sbr.rel (0) target = $region29
  $region28: #{_lambda_.1} parent=0 // pred_region
    _
  $region29: #{_lambda_.1} parent=0 // pred_fallthru
    _
  // Predicated region
  $region30: #{_lambda_.1} parent=0 // pred_check
    _
  $region31: #{_lambda_.1} parent=0 // pred_check_branch
    %44 = sbr.rel (0) target = $region33
  $region32: #{_lambda_.1} parent=0 // pred_region
    _
  $region33: #{_lambda_.1} parent=0 // pred_fallthru
    _
  // Predicated region
  $region34: #{_lambda_.1} parent=0 // pred_check
    _
  $region35: #{_lambda_.1} parent=0 // pred_check_branch
    %46 = sbr.rel (0) target = $region37
  $region36: #{_lambda_.1} parent=0 // pred_region
    _
  $region37: #{_lambda_.1} parent=0 // pred_fallthru
    _
  // Predicated region
  $region38: #{_lambda_.1} parent=0 // pred_check
    _
  $region39: #{_lambda_.1} parent=0 // pred_check_branch
    %48 = sbr.rel (0) target = $region41
  $region40: #{_lambda_.1} parent=0 // pred_region
    _
  $region41: #{_lambda_.1} parent=0 // pred_fallthru
    _
  // Predicated region
  $region42: #{_lambda_.1} parent=0 // pred_check
    _
  $region43: #{_lambda_.1} parent=0 // pred_check_branch
    %50 = sbr.rel (0) target = $region45
  $region44: #{_lambda_.1} parent=0 // pred_region
    _
  $region45: #{_lambda_.1} parent=0 // pred_fallthru
    _
  // Predicated region
  $region46: #{_lambda_.1} parent=0 // pred_check
    _
  $region47: #{_lambda_.1} parent=0 // pred_check_branch
    %52 = sbr.rel (0) target = $region49
  $region48: #{_lambda_.1} parent=0 // pred_region
    _
  $region49: #{_lambda_.1} parent=0 // pred_fallthru
    _
  // Predicated region
  $region50: #{_lambda_.1} parent=0 // pred_check
    _
  $region51: #{_lambda_.1} parent=0 // pred_check_branch
    %54 = sbr.rel (0) target = $region53
  $region52: #{_lambda_.1} parent=0 // pred_region
    _
  $region53: #{_lambda_.1} parent=0 // pred_fallthru
    _
  // Predicated region
  $region54: #{_lambda_.1} parent=0 // pred_check
    _
  $region55: #{_lambda_.1} parent=0 // pred_check_branch
    %56 = sbr.rel (0) target = $region57
  $region56: #{_lambda_.1} parent=0 // pred_region
    _
  $region57: #{_lambda_.1} parent=0 // pred_fallthru
    _
  // Predicated region
  $region58: #{_lambda_.1} parent=0 // pred_check
    _
  $region59: #{_lambda_.1} parent=0 // pred_check_branch
    %58 = sbr.rel (0) target = $region61
  $region60: #{_lambda_.1} parent=0 // pred_region
    _
  $region61: #{_lambda_.1} parent=0 // pred_fallthru
    _
  // Predicated region
  $region62: #{_lambda_.1} parent=0 // pred_check
    _
  $region63: #{_lambda_.1} parent=0 // pred_check_branch
    %60 = sbr.rel (0) target = $region65
  $region64: #{_lambda_.1} parent=0 // pred_region
    _
  $region65: #{_lambda_.1} parent=0 // pred_fallthru
    _
  // Predicated region
  $region66: #{_lambda_.1} parent=0 // pred_check
    _
  $region67: #{_lambda_.1} parent=0 // pred_check_branch
    %62 = sbr.rel (0) target = $region69
  $region68: #{_lambda_.1} parent=0 // pred_region
    _
  $region69: #{_lambda_.1} parent=0 // pred_fallthru
    _
  // Predicated region
  $region70: #{_lambda_.1} parent=0 // pred_check
    _
  $region71: #{_lambda_.1} parent=0 // pred_check_branch
    %64 = sbr.rel (0) target = $region73
  $region72: #{_lambda_.1} parent=0 // pred_region
    _
  $region73: #{_lambda_.1} parent=0 // pred_fallthru
    _
  // Predicated region
  $region74: #{_lambda_.1} parent=0 // pred_check
    _
  $region75: #{_lambda_.1} parent=0 // pred_check_branch
    %66 = sbr.rel (0) target = $region77
  $region76: #{_lambda_.1} parent=0 // pred_region
    _
  $region77: #{_lambda_.1} parent=0 // pred_fallthru
    _
  // Predicated region
  $region78: #{_lambda_.1} parent=0 // pred_check
    _
  $region79: #{_lambda_.1} parent=0 // pred_check_branch
    %68 = sbr.rel (0) target = $region81
  $region80: #{_lambda_.1} parent=0 // pred_region
    _
  $region81: #{_lambda_.1} parent=0 // pred_fallthru
    _
  // Predicated region
  $region82: #{_lambda_.1} parent=0 // pred_check
    _
  $region83: #{_lambda_.1} parent=0 // pred_check_branch
    %70 = sbr.rel (0) target = $region85
  $region84: #{_lambda_.1} parent=0 // pred_region
    _
  $region85: #{_lambda_.1} parent=0 // pred_fallthru
    _
  %v72 = vld [vmem:[%s0] sm:$0x3]
  %v73 = vpack.c.bf16 %v72, %v72
  %v74 = vld [vmem:[%s5] sm:$0xf]
  %v75 = vld [vmem:[%s5 + $0x4] sm:$0xf]
  %v76 = vld [vmem:[%s5 + $0x8] sm:$0xf]
  %v77 = vld [vmem:[%s5 + $0xc] sm:$0xf]
  %v78 = vld [vmem:[%s1] sm:$0x1]
  %v79 = vpack.c.bf16 %v78, %v78
  %v80 = vld [vmem:[%s4] sm:$0xf]
  %v81 = vld [vmem:[%s4 + $0x4] sm:$0xf]
  %v82 = vld [vmem:[%s4 + $0x8] sm:$0xf]
  %v83 = vld [vmem:[%s4 + $0xc] sm:$0xf]
  %v84 = vld [vmem:[%s4 + $0x10] sm:$0xf]
  %v85 = vld [vmem:[%s4 + $0x14] sm:$0xf]
  %v86 = vld [vmem:[%s4 + $0x18] sm:$0xf]
  %v87 = vld [vmem:[%s4 + $0x1c] sm:$0xf]
  %v88 = vld [vmem:[%s4 + $0x20] sm:$0xf]
  %v89 = vld [vmem:[%s4 + $0x24] sm:$0xf]
  %v90 = vld [vmem:[%s4 + $0x28] sm:$0xf]
  %v91 = vld [vmem:[%s4 + $0x2c] sm:$0xf]
  %v92 = vld [vmem:[%s4 + $0x30] sm:$0xf]
  %v93 = vld [vmem:[%s4 + $0x34] sm:$0xf]
  %v94 = vld [vmem:[%s4 + $0x38] sm:$0xf]
  %v95 = vld [vmem:[%s4 + $0x3c] sm:$0xf]
  %v112 = vunpack.c.l.b16 %v80
  %v113 = vunpack.c.l.b16 %v81
  %v114 = vunpack.c.l.b16 %v82
  %v115 = vunpack.c.l.b16 %v83
  %v116 = vunpack.c.l.b16 %v84
  %v117 = vunpack.c.l.b16 %v85
  %v118 = vunpack.c.l.b16 %v86
  %v119 = vunpack.c.l.b16 %v87
  %v120 = vunpack.c.l.b16 %v88
  %v121 = vunpack.c.l.b16 %v89
  %v122 = vunpack.c.l.b16 %v90
  %v123 = vunpack.c.l.b16 %v91
  %v124 = vunpack.c.l.b16 %v92
  %v125 = vunpack.c.l.b16 %v93
  %v126 = vunpack.c.l.b16 %v94
  %v127 = vunpack.c.l.b16 %v95
  %v128 = vpack.c.b16 %v113, %v112
  %v129 = vpack.c.b16 %v115, %v114
  %v130 = vpack.c.b16 %v117, %v116
  %v131 = vpack.c.b16 %v119, %v118
  %v132 = vpack.c.b16 %v121, %v120
  %v133 = vpack.c.b16 %v123, %v122
  %v134 = vpack.c.b16 %v125, %v124
  %v135 = vpack.c.b16 %v127, %v126
  %144 = vmatpush.bf16.msra.mxu0 %v135
  %145 = vmatpush.bf16.msra.mxu0 %v134
  %146 = vmatpush.bf16.msra.mxu0 %v133
  %147 = vmatpush.bf16.msra.mxu0 %v132
  %148 = vmatpush.bf16.msra.mxu0 %v131
  %149 = vmatpush.bf16.msra.mxu0 %v130
  %150 = vmatpush.bf16.msra.mxu0 %v129
  %151 = vmatpush.bf16.msra.mxu0 %v128
  %152 = vmatmul.bf16.gmra.mxu0 %v79
  %v153 = vpop.f32.mrf.mxu0
  %v154 = vadd.f32 0.0, %v153
  %v155 = vpop.f32.mrf.mxu0
  %156 = vdwg.mxu0
  %v157 = vperm.slane %v154, 0
  %v162 = vunpack.c.l.b16 %v74
  %v163 = vunpack.c.l.b16 %v75
  %v164 = vunpack.c.l.b16 %v76
  %v165 = vunpack.c.l.b16 %v77
  %v166 = vpack.c.b16 %v163, %v162
  %v167 = vpack.c.b16 %v165, %v164
  %vm170 = vcmask 261120
  %v172 = vsel %vm170, %v73, 0
  %174 = vmatpush.bf16.msra.mxu0 0
  %175 = vmatpush.bf16.msra.mxu0 0
  %176 = vmatpush.bf16.msra.mxu0 0
  %177 = vmatpush.bf16.msra.mxu0 0
  %178 = vmatpush.bf16.msra.mxu0 0
  %179 = vmatpush.bf16.msra.mxu0 0
  %180 = vmatpush.bf16.msra.mxu0 %v167
  %181 = vmatpush.bf16.msra.mxu0 %v166
  %182 = vmatmul.bf16.gmra.mxu0 %v172
  %v183 = vpop.f32.mrf.mxu0
  %v184 = vadd.f32 %v157, %v183
  %v185 = vpop.f32.mrf.mxu0
  %186 = vdwg.mxu0
  %v187 = vld [vmem:[%s6] sm:$0x1]
  %v189 = vperm.slane %v187, 0
  %v191 = vadd.f32 %v184, %v189
  %v192 = vld [vmem:[%s7] sm:$0xf]
  %v193 = vld [vmem:[%s7 + $0x4] sm:$0xf]
  %v194 = vld [vmem:[%s7 + $0x8] sm:$0xf]
  %v195 = vld [vmem:[%s7 + $0xc] sm:$0xf]
  %v196 = vld [vmem:[%s7 + $0x10] sm:$0xf]
  %v197 = vld [vmem:[%s7 + $0x14] sm:$0xf]
  %v198 = vld [vmem:[%s7 + $0x18] sm:$0xf]
  %v199 = vld [vmem:[%s7 + $0x1c] sm:$0xf]
  %v200 = vld [vmem:[%s7 + $0x20] sm:$0xf]
  %v201 = vld [vmem:[%s7 + $0x24] sm:$0xf]
  %v202 = vld [vmem:[%s7 + $0x28] sm:$0xf]
  %v203 = vld [vmem:[%s7 + $0x2c] sm:$0xf]
  %v204 = vld [vmem:[%s7 + $0x30] sm:$0xf]
  %v205 = vld [vmem:[%s7 + $0x34] sm:$0xf]
  %v206 = vld [vmem:[%s7 + $0x38] sm:$0xf]
  %v207 = vld [vmem:[%s7 + $0x3c] sm:$0xf]
  %s208 = scalar_lea.vmem %s7, 64
  %v209 = vld [vmem:[%s208] sm:$0xf]
  %v210 = vld [vmem:[%s208 + $0x4] sm:$0xf]
  %v211 = vld [vmem:[%s208 + $0x8] sm:$0xf]
  %v212 = vld [vmem:[%s208 + $0xc] sm:$0xf]
  %v213 = vld [vmem:[%s208 + $0x10] sm:$0xf]
  %v214 = vld [vmem:[%s208 + $0x14] sm:$0xf]
  %v215 = vld [vmem:[%s208 + $0x18] sm:$0xf]
  %v216 = vld [vmem:[%s208 + $0x1c] sm:$0xf]
  %v217 = vld [vmem:[%s208 + $0x20] sm:$0xf]
  %v218 = vld [vmem:[%s208 + $0x24] sm:$0xf]
  %v219 = vld [vmem:[%s208 + $0x28] sm:$0xf]
  %v220 = vld [vmem:[%s208 + $0x2c] sm:$0xf]
  %v221 = vld [vmem:[%s208 + $0x30] sm:$0xf]
  %v222 = vld [vmem:[%s208 + $0x34] sm:$0xf]
  %v223 = vld [vmem:[%s208 + $0x38] sm:$0xf]
  %v224 = vld [vmem:[%s208 + $0x3c] sm:$0xf]
  %v225 = vld [vmem:[%s8] sm:$0x1]
  %s226 = scalar_lea.vmem %s8, 1
  %v227 = vld [vmem:[%s226] sm:$0x1]
  %v228 = vpack.c.bf16 %v191, %v191
  %v230 = vperm.slane %v225, 0
  %v248 = vunpack.c.l.b16 %v192
  %v249 = vunpack.c.l.b16 %v193
  %v250 = vunpack.c.l.b16 %v194
  %v251 = vunpack.c.l.b16 %v195
  %v252 = vunpack.c.l.b16 %v196
  %v253 = vunpack.c.l.b16 %v197
  %v254 = vunpack.c.l.b16 %v198
  %v255 = vunpack.c.l.b16 %v199
  %v256 = vunpack.c.l.b16 %v200
  %v257 = vunpack.c.l.b16 %v201
  %v258 = vunpack.c.l.b16 %v202
  %v259 = vunpack.c.l.b16 %v203
  %v260 = vunpack.c.l.b16 %v204
  %v261 = vunpack.c.l.b16 %v205
  %v262 = vunpack.c.l.b16 %v206
  %v263 = vunpack.c.l.b16 %v207
  %v264 = vpack.c.b16 %v249, %v248
  %v265 = vpack.c.b16 %v251, %v250
  %v266 = vpack.c.b16 %v253, %v252
  %v267 = vpack.c.b16 %v255, %v254
  %v268 = vpack.c.b16 %v257, %v256
  %v269 = vpack.c.b16 %v259, %v258
  %v270 = vpack.c.b16 %v261, %v260
  %v271 = vpack.c.b16 %v263, %v262
  %280 = vmatpush.bf16.msra.mxu0 %v271
  %281 = vmatpush.bf16.msra.mxu0 %v270
  %282 = vmatpush.bf16.msra.mxu0 %v269
  %283 = vmatpush.bf16.msra.mxu0 %v268
  %284 = vmatpush.bf16.msra.mxu0 %v267
  %285 = vmatpush.bf16.msra.mxu0 %v266
  %286 = vmatpush.bf16.msra.mxu0 %v265
  %287 = vmatpush.bf16.msra.mxu0 %v264
  %288 = vmatmul.bf16.gmra.mxu0 %v228
  %v289 = vpop.f32.mrf.mxu0
  %v290 = vadd.f32 %v230, %v289
  %v291 = vpop.f32.mrf.mxu0
  %292 = vdwg.mxu0
  %v293 = vmax.f32 %v290, 0.0
  %v294 = vpack.c.bf16 %v293, %v293
  %v296 = vperm.slane %v227, 0
  %v314 = vunpack.c.l.b16 %v209
  %v315 = vunpack.c.l.b16 %v210
  %v316 = vunpack.c.l.b16 %v211
  %v317 = vunpack.c.l.b16 %v212
  %v318 = vunpack.c.l.b16 %v213
  %v319 = vunpack.c.l.b16 %v214
  %v320 = vunpack.c.l.b16 %v215
  %v321 = vunpack.c.l.b16 %v216
  %v322 = vunpack.c.l.b16 %v217
  %v323 = vunpack.c.l.b16 %v218
  %v324 = vunpack.c.l.b16 %v219
  %v325 = vunpack.c.l.b16 %v220
  %v326 = vunpack.c.l.b16 %v221
  %v327 = vunpack.c.l.b16 %v222
  %v328 = vunpack.c.l.b16 %v223
  %v329 = vunpack.c.l.b16 %v224
  %v330 = vpack.c.b16 %v315, %v314
  %v331 = vpack.c.b16 %v317, %v316
  %v332 = vpack.c.b16 %v319, %v318
  %v333 = vpack.c.b16 %v321, %v320
  %v334 = vpack.c.b16 %v323, %v322
  %v335 = vpack.c.b16 %v325, %v324
  %v336 = vpack.c.b16 %v327, %v326
  %v337 = vpack.c.b16 %v329, %v328
  %346 = vmatpush.bf16.msra.mxu0 %v337
  %347 = vmatpush.bf16.msra.mxu0 %v336
  %348 = vmatpush.bf16.msra.mxu0 %v335
  %349 = vmatpush.bf16.msra.mxu0 %v334
  %350 = vmatpush.bf16.msra.mxu0 %v333
  %351 = vmatpush.bf16.msra.mxu0 %v332
  %352 = vmatpush.bf16.msra.mxu0 %v331
  %353 = vmatpush.bf16.msra.mxu0 %v330
  %354 = vmatmul.bf16.gmra.mxu0 %v294
  %v355 = vpop.f32.mrf.mxu0
  %v356 = vadd.f32 %v296, %v355
  %v357 = vpop.f32.mrf.mxu0
  %358 = vdwg.mxu0
  %v359 = vmax.f32 %v356, 0.0
  %v360 = vadd.f32 %v359, %v191
  %s361 = scalar_lea.vmem %s7, 128
  %v362 = vld [vmem:[%s361] sm:$0xf]
  %v363 = vld [vmem:[%s361 + $0x4] sm:$0xf]
  %v364 = vld [vmem:[%s361 + $0x8] sm:$0xf]
  %v365 = vld [vmem:[%s361 + $0xc] sm:$0xf]
  %v366 = vld [vmem:[%s361 + $0x10] sm:$0xf]
  %v367 = vld [vmem:[%s361 + $0x14] sm:$0xf]
  %v368 = vld [vmem:[%s361 + $0x18] sm:$0xf]
  %v369 = vld [vmem:[%s361 + $0x1c] sm:$0xf]
  %v370 = vld [vmem:[%s361 + $0x20] sm:$0xf]
  %v371 = vld [vmem:[%s361 + $0x24] sm:$0xf]
  %v372 = vld [vmem:[%s361 + $0x28] sm:$0xf]
  %v373 = vld [vmem:[%s361 + $0x2c] sm:$0xf]
  %v374 = vld [vmem:[%s361 + $0x30] sm:$0xf]
  %v375 = vld [vmem:[%s361 + $0x34] sm:$0xf]
  %v376 = vld [vmem:[%s361 + $0x38] sm:$0xf]
  %v377 = vld [vmem:[%s361 + $0x3c] sm:$0xf]
  %s378 = scalar_lea.vmem %s7, 192
  %v379 = vld [vmem:[%s378] sm:$0xf]
  %v380 = vld [vmem:[%s378 + $0x4] sm:$0xf]
  %v381 = vld [vmem:[%s378 + $0x8] sm:$0xf]
  %v382 = vld [vmem:[%s378 + $0xc] sm:$0xf]
  %v383 = vld [vmem:[%s378 + $0x10] sm:$0xf]
  %v384 = vld [vmem:[%s378 + $0x14] sm:$0xf]
  %v385 = vld [vmem:[%s378 + $0x18] sm:$0xf]
  %v386 = vld [vmem:[%s378 + $0x1c] sm:$0xf]
  %v387 = vld [vmem:[%s378 + $0x20] sm:$0xf]
  %v388 = vld [vmem:[%s378 + $0x24] sm:$0xf]
  %v389 = vld [vmem:[%s378 + $0x28] sm:$0xf]
  %v390 = vld [vmem:[%s378 + $0x2c] sm:$0xf]
  %v391 = vld [vmem:[%s378 + $0x30] sm:$0xf]
  %v392 = vld [vmem:[%s378 + $0x34] sm:$0xf]
  %v393 = vld [vmem:[%s378 + $0x38] sm:$0xf]
  %v394 = vld [vmem:[%s378 + $0x3c] sm:$0xf]
  %s395 = scalar_lea.vmem %s8, 2
  %v396 = vld [vmem:[%s395] sm:$0x1]
  %s397 = scalar_lea.vmem %s8, 3
  %v398 = vld [vmem:[%s397] sm:$0x1]
  %v399 = vpack.c.bf16 %v360, %v360
  %v401 = vperm.slane %v396, 0
  %v419 = vunpack.c.l.b16 %v362
  %v420 = vunpack.c.l.b16 %v363
  %v421 = vunpack.c.l.b16 %v364
  %v422 = vunpack.c.l.b16 %v365
  %v423 = vunpack.c.l.b16 %v366
  %v424 = vunpack.c.l.b16 %v367
  %v425 = vunpack.c.l.b16 %v368
  %v426 = vunpack.c.l.b16 %v369
  %v427 = vunpack.c.l.b16 %v370
  %v428 = vunpack.c.l.b16 %v371
  %v429 = vunpack.c.l.b16 %v372
  %v430 = vunpack.c.l.b16 %v373
  %v431 = vunpack.c.l.b16 %v374
  %v432 = vunpack.c.l.b16 %v375
  %v433 = vunpack.c.l.b16 %v376
  %v434 = vunpack.c.l.b16 %v377
  %v435 = vpack.c.b16 %v420, %v419
  %v436 = vpack.c.b16 %v422, %v421
  %v437 = vpack.c.b16 %v424, %v423
  %v438 = vpack.c.b16 %v426, %v425
  %v439 = vpack.c.b16 %v428, %v427
  %v440 = vpack.c.b16 %v430, %v429
  %v441 = vpack.c.b16 %v432, %v431
  %v442 = vpack.c.b16 %v434, %v433
  %451 = vmatpush.bf16.msra.mxu0 %v442
  %452 = vmatpush.bf16.msra.mxu0 %v441
  %453 = vmatpush.bf16.msra.mxu0 %v440
  %454 = vmatpush.bf16.msra.mxu0 %v439
  %455 = vmatpush.bf16.msra.mxu0 %v438
  %456 = vmatpush.bf16.msra.mxu0 %v437
  %457 = vmatpush.bf16.msra.mxu0 %v436
  %458 = vmatpush.bf16.msra.mxu0 %v435
  %459 = vmatmul.bf16.gmra.mxu0 %v399
  %v460 = vpop.f32.mrf.mxu0
  %v461 = vadd.f32 %v401, %v460
  %v462 = vpop.f32.mrf.mxu0
  %463 = vdwg.mxu0
  %v464 = vmax.f32 %v461, 0.0
  %v465 = vpack.c.bf16 %v464, %v464
  %v467 = vperm.slane %v398, 0
  %v485 = vunpack.c.l.b16 %v379
  %v486 = vunpack.c.l.b16 %v380
  %v487 = vunpack.c.l.b16 %v381
  %v488 = vunpack.c.l.b16 %v382
  %v489 = vunpack.c.l.b16 %v383
  %v490 = vunpack.c.l.b16 %v384
  %v491 = vunpack.c.l.b16 %v385
  %v492 = vunpack.c.l.b16 %v386
  %v493 = vunpack.c.l.b16 %v387
  %v494 = vunpack.c.l.b16 %v388
  %v495 = vunpack.c.l.b16 %v389
  %v496 = vunpack.c.l.b16 %v390
  %v497 = vunpack.c.l.b16 %v391
  %v498 = vunpack.c.l.b16 %v392
  %v499 = vunpack.c.l.b16 %v393
  %v500 = vunpack.c.l.b16 %v394
  %v501 = vpack.c.b16 %v486, %v485
  %v502 = vpack.c.b16 %v488, %v487
  %v503 = vpack.c.b16 %v490, %v489
  %v504 = vpack.c.b16 %v492, %v491
  %v505 = vpack.c.b16 %v494, %v493
  %v506 = vpack.c.b16 %v496, %v495
  %v507 = vpack.c.b16 %v498, %v497
  %v508 = vpack.c.b16 %v500, %v499
  %517 = vmatpush.bf16.msra.mxu0 %v508
  %518 = vmatpush.bf16.msra.mxu0 %v507
  %519 = vmatpush.bf16.msra.mxu0 %v506
  %520 = vmatpush.bf16.msra.mxu0 %v505
  %521 = vmatpush.bf16.msra.mxu0 %v504
  %522 = vmatpush.bf16.msra.mxu0 %v503
  %523 = vmatpush.bf16.msra.mxu0 %v502
  %524 = vmatpush.bf16.msra.mxu0 %v501
  %525 = vmatmul.bf16.gmra.mxu0 %v465
  %v526 = vpop.f32.mrf.mxu0
  %v527 = vadd.f32 %v467, %v526
  %v528 = vpop.f32.mrf.mxu0
  %529 = vdwg.mxu0
  %v530 = vmax.f32 %v527, 0.0
  %v531 = vadd.f32 %v530, %v360
  %v532 = vpack.c.bf16 %v531, %v531
  %v533 = vld [vmem:[%s9] sm:$0xf]
  %v534 = vld [vmem:[%s9 + $0x4] sm:$0xf]
  %v535 = vld [vmem:[%s9 + $0x8] sm:$0xf]
  %v536 = vld [vmem:[%s9 + $0xc] sm:$0xf]
  %v537 = vld [vmem:[%s9 + $0x10] sm:$0xf]
  %v538 = vld [vmem:[%s9 + $0x14] sm:$0xf]
  %v539 = vld [vmem:[%s9 + $0x18] sm:$0xf]
  %v540 = vld [vmem:[%s9 + $0x1c] sm:$0xf]
  %v541 = vld [vmem:[%s9 + $0x20] sm:$0xf]
  %v542 = vld [vmem:[%s9 + $0x24] sm:$0xf]
  %v543 = vld [vmem:[%s9 + $0x28] sm:$0xf]
  %v544 = vld [vmem:[%s9 + $0x2c] sm:$0xf]
  %v545 = vld [vmem:[%s9 + $0x30] sm:$0xf]
  %v546 = vld [vmem:[%s9 + $0x34] sm:$0xf]
  %v547 = vld [vmem:[%s9 + $0x38] sm:$0xf]
  %v548 = vld [vmem:[%s9 + $0x3c] sm:$0xf]
  %v549 = vld [vmem:[%s10] sm:$0x1]
  %v551 = vperm.slane %v549, 0
  %v569 = vunpack.c.l.b16 %v533
  %v570 = vunpack.c.l.b16 %v534
  %v571 = vunpack.c.l.b16 %v535
  %v572 = vunpack.c.l.b16 %v536
  %v573 = vunpack.c.l.b16 %v537
  %v574 = vunpack.c.l.b16 %v538
  %v575 = vunpack.c.l.b16 %v539
  %v576 = vunpack.c.l.b16 %v540
  %v577 = vunpack.c.l.b16 %v541
  %v578 = vunpack.c.l.b16 %v542
  %v579 = vunpack.c.l.b16 %v543
  %v580 = vunpack.c.l.b16 %v544
  %v581 = vunpack.c.l.b16 %v545
  %v582 = vunpack.c.l.b16 %v546
  %v583 = vunpack.c.l.b16 %v547
  %v584 = vunpack.c.l.b16 %v548
  %v585 = vpack.c.b16 %v570, %v569
  %v586 = vpack.c.b16 %v572, %v571
  %v587 = vpack.c.b16 %v574, %v573
  %v588 = vpack.c.b16 %v576, %v575
  %v589 = vpack.c.b16 %v578, %v577
  %v590 = vpack.c.b16 %v580, %v579
  %v591 = vpack.c.b16 %v582, %v581
  %v592 = vpack.c.b16 %v584, %v583
  %601 = vmatpush.bf16.msra.mxu0 %v592
  %602 = vmatpush.bf16.msra.mxu0 %v591
  %603 = vmatpush.bf16.msra.mxu0 %v590
  %604 = vmatpush.bf16.msra.mxu0 %v589
  %605 = vmatpush.bf16.msra.mxu0 %v588
  %606 = vmatpush.bf16.msra.mxu0 %v587
  %607 = vmatpush.bf16.msra.mxu0 %v586
  %608 = vmatpush.bf16.msra.mxu0 %v585
  %609 = vmatmul.bf16.gmra.mxu0 %v532
  %v610 = vpop.f32.mrf.mxu0
  %v611 = vadd.f32 %v551, %v610
  %v612 = vpop.f32.mrf.mxu0
  %613 = vdwg.mxu0
  %vm614 = vcmask 58368
  %v615 = vsel %vm614, %v611, -inf
  %616 = vmax.xlane.f32.xlu0 %v615
  %v617 = vpop.xlane.xlu0 %616
  %v618 = vsub.f32 %v611, %v617
  %v619 = vmul.f32 %v618, 1.442695
  %v620 = vpow.pop %v619
  %v621 = vsel %vm614, %v620, 0.0
  %622 = vadd.xlane.f32.xlu0 %v621
  %v623 = vpop.xlane.xlu0 %622
  %v624 = vlog2.pop %v623
  %v625 = vmul.f32 %v624, 0.6931472
  %v626 = vsub.f32 %v618, %v625
  %627 = vst.msk [vmem:[%s21] sm:$0x3] %vm614, %v626
  %v628 = vld [vmem:[%s12] sm:$0xf]
  %v629 = vld [vmem:[%s12 + $0x4] sm:$0xf]
  %v630 = vld [vmem:[%s12 + $0x8] sm:$0xf]
  %v631 = vld [vmem:[%s12 + $0xc] sm:$0xf]
  %v636 = vunpack.c.l.b16 %v628
  %v637 = vunpack.c.l.b16 %v629
  %v638 = vunpack.c.l.b16 %v630
  %v639 = vunpack.c.l.b16 %v631
  %v640 = vpack.c.b16 %v637, %v636
  %v641 = vpack.c.b16 %v639, %v638
  %644 = vmatpush.bf16.msra.mxu0 0
  %645 = vmatpush.bf16.msra.mxu0 0
  %646 = vmatpush.bf16.msra.mxu0 0
  %647 = vmatpush.bf16.msra.mxu0 0
  %648 = vmatpush.bf16.msra.mxu0 0
  %649 = vmatpush.bf16.msra.mxu0 0
  %650 = vmatpush.bf16.msra.mxu0 %v641
  %651 = vmatpush.bf16.msra.mxu0 %v640
  %652 = vmatmul.bf16.gmra.mxu0 %v172
  %v653 = vpop.f32.mrf.mxu0
  %v654 = vadd.f32 0.0, %v653
  %v655 = vpop.f32.mrf.mxu0
  %656 = vdwg.mxu0
  %v657 = vld [vmem:[%s2] sm:$0xff]
  %v658 = vpack.c.bf16 %v657, %v657
  %v659 = vld [vmem:[%s11] sm:$0xf]
  %v660 = vld [vmem:[%s11 + $0x4] sm:$0xf]
  %v661 = vld [vmem:[%s11 + $0x8] sm:$0xf]
  %v662 = vld [vmem:[%s11 + $0xc] sm:$0xf]
  %v663 = vld [vmem:[%s11 + $0x10] sm:$0xf]
  %v664 = vld [vmem:[%s11 + $0x14] sm:$0xf]
  %v665 = vld [vmem:[%s11 + $0x18] sm:$0xf]
  %v666 = vld [vmem:[%s11 + $0x1c] sm:$0xf]
  %v667 = vld [vmem:[%s11 + $0x20] sm:$0xf]
  %v668 = vld [vmem:[%s11 + $0x24] sm:$0xf]
  %v669 = vld [vmem:[%s11 + $0x28] sm:$0xf]
  %v670 = vld [vmem:[%s11 + $0x2c] sm:$0xf]
  %v671 = vld [vmem:[%s11 + $0x30] sm:$0xf]
  %v672 = vld [vmem:[%s11 + $0x34] sm:$0xf]
  %v673 = vld [vmem:[%s11 + $0x38] sm:$0xf]
  %v674 = vld [vmem:[%s11 + $0x3c] sm:$0xf]
  %v691 = vunpack.c.l.b16 %v659
  %v692 = vunpack.c.l.b16 %v660
  %v693 = vunpack.c.l.b16 %v661
  %v694 = vunpack.c.l.b16 %v662
  %v695 = vunpack.c.l.b16 %v663
  %v696 = vunpack.c.l.b16 %v664
  %v697 = vunpack.c.l.b16 %v665
  %v698 = vunpack.c.l.b16 %v666
  %v699 = vunpack.c.l.b16 %v667
  %v700 = vunpack.c.l.b16 %v668
  %v701 = vunpack.c.l.b16 %v669
  %v702 = vunpack.c.l.b16 %v670
  %v703 = vunpack.c.l.b16 %v671
  %v704 = vunpack.c.l.b16 %v672
  %v705 = vunpack.c.l.b16 %v673
  %v706 = vunpack.c.l.b16 %v674
  %v707 = vpack.c.b16 %v692, %v691
  %v708 = vpack.c.b16 %v694, %v693
  %v709 = vpack.c.b16 %v696, %v695
  %v710 = vpack.c.b16 %v698, %v697
  %v711 = vpack.c.b16 %v700, %v699
  %v712 = vpack.c.b16 %v702, %v701
  %v713 = vpack.c.b16 %v704, %v703
  %v714 = vpack.c.b16 %v706, %v705
  %723 = vmatpush.bf16.msra.mxu0 %v714
  %724 = vmatpush.bf16.msra.mxu0 %v713
  %725 = vmatpush.bf16.msra.mxu0 %v712
  %726 = vmatpush.bf16.msra.mxu0 %v711
  %727 = vmatpush.bf16.msra.mxu0 %v710
  %728 = vmatpush.bf16.msra.mxu0 %v709
  %729 = vmatpush.bf16.msra.mxu0 %v708
  %730 = vmatpush.bf16.msra.mxu0 %v707
  %731 = vmatmul.bf16.gmra.mxu0 %v658
  %v732 = vpop.f32.mrf.mxu0
  %v733 = vadd.f32 0.0, %v732
  %v734 = vpop.f32.mrf.mxu0
  %735 = vdwg.mxu0
  %v737 = vrot.slane %v654, 1
  %v738 = vperm.slane %v654, 0
  %v739 = vperm.slane %v737, 0
  %v742 = vadd.f32 %v738, %v733
  %v743 = vadd.f32 %v739, %v733
  %v744 = vld [vmem:[%s13] sm:$0x1]
  %v746 = vperm.slane %v744, 0
  %v748 = vadd.f32 %v742, %v746
  %v749 = vadd.f32 %v743, %v746
  %v750 = vld [vmem:[%s14] sm:$0xf]
  %v751 = vld [vmem:[%s14 + $0x4] sm:$0xf]
  %v752 = vld [vmem:[%s14 + $0x8] sm:$0xf]
  %v753 = vld [vmem:[%s14 + $0xc] sm:$0xf]
  %v754 = vld [vmem:[%s14 + $0x10] sm:$0xf]
  %v755 = vld [vmem:[%s14 + $0x14] sm:$0xf]
  %v756 = vld [vmem:[%s14 + $0x18] sm:$0xf]
  %v757 = vld [vmem:[%s14 + $0x1c] sm:$0xf]
  %v758 = vld [vmem:[%s14 + $0x20] sm:$0xf]
  %v759 = vld [vmem:[%s14 + $0x24] sm:$0xf]
  %v760 = vld [vmem:[%s14 + $0x28] sm:$0xf]
  %v761 = vld [vmem:[%s14 + $0x2c] sm:$0xf]
  %v762 = vld [vmem:[%s14 + $0x30] sm:$0xf]
  %v763 = vld [vmem:[%s14 + $0x34] sm:$0xf]
  %v764 = vld [vmem:[%s14 + $0x38] sm:$0xf]
  %v765 = vld [vmem:[%s14 + $0x3c] sm:$0xf]
  %s766 = scalar_lea.vmem %s14, 64
  %v767 = vld [vmem:[%s766] sm:$0xf]
  %v768 = vld [vmem:[%s766 + $0x4] sm:$0xf]
  %v769 = vld [vmem:[%s766 + $0x8] sm:$0xf]
  %v770 = vld [vmem:[%s766 + $0xc] sm:$0xf]
  %v771 = vld [vmem:[%s766 + $0x10] sm:$0xf]
  %v772 = vld [vmem:[%s766 + $0x14] sm:$0xf]
  %v773 = vld [vmem:[%s766 + $0x18] sm:$0xf]
  %v774 = vld [vmem:[%s766 + $0x1c] sm:$0xf]
  %v775 = vld [vmem:[%s766 + $0x20] sm:$0xf]
  %v776 = vld [vmem:[%s766 + $0x24] sm:$0xf]
  %v777 = vld [vmem:[%s766 + $0x28] sm:$0xf]
  %v778 = vld [vmem:[%s766 + $0x2c] sm:$0xf]
  %v779 = vld [vmem:[%s766 + $0x30] sm:$0xf]
  %v780 = vld [vmem:[%s766 + $0x34] sm:$0xf]
  %v781 = vld [vmem:[%s766 + $0x38] sm:$0xf]
  %v782 = vld [vmem:[%s766 + $0x3c] sm:$0xf]
  %v783 = vld [vmem:[%s15] sm:$0x1]
  %s784 = scalar_lea.vmem %s15, 1
  %v785 = vld [vmem:[%s784] sm:$0x1]
  %v786 = vpack.c.bf16 %v749, %v748
  %v788 = vperm.slane %v783, 0
  %v806 = vunpack.c.l.b16 %v750
  %v807 = vunpack.c.l.b16 %v751
  %v808 = vunpack.c.l.b16 %v752
  %v809 = vunpack.c.l.b16 %v753
  %v810 = vunpack.c.l.b16 %v754
  %v811 = vunpack.c.l.b16 %v755
  %v812 = vunpack.c.l.b16 %v756
  %v813 = vunpack.c.l.b16 %v757
  %v814 = vunpack.c.l.b16 %v758
  %v815 = vunpack.c.l.b16 %v759
  %v816 = vunpack.c.l.b16 %v760
  %v817 = vunpack.c.l.b16 %v761
  %v818 = vunpack.c.l.b16 %v762
  %v819 = vunpack.c.l.b16 %v763
  %v820 = vunpack.c.l.b16 %v764
  %v821 = vunpack.c.l.b16 %v765
  %v822 = vpack.c.b16 %v807, %v806
  %v823 = vpack.c.b16 %v809, %v808
  %v824 = vpack.c.b16 %v811, %v810
  %v825 = vpack.c.b16 %v813, %v812
  %v826 = vpack.c.b16 %v815, %v814
  %v827 = vpack.c.b16 %v817, %v816
  %v828 = vpack.c.b16 %v819, %v818
  %v829 = vpack.c.b16 %v821, %v820
  %838 = vmatpush.bf16.msra.mxu0 %v829
  %839 = vmatpush.bf16.msra.mxu0 %v828
  %840 = vmatpush.bf16.msra.mxu0 %v827
  %841 = vmatpush.bf16.msra.mxu0 %v826
  %842 = vmatpush.bf16.msra.mxu0 %v825
  %843 = vmatpush.bf16.msra.mxu0 %v824
  %844 = vmatpush.bf16.msra.mxu0 %v823
  %845 = vmatpush.bf16.msra.mxu0 %v822
  %846 = vmatmul.bf16.gmra.mxu0 %v786
  %v847 = vpop.f32.mrf.mxu0
  %v848 = vadd.f32 %v788, %v847
  %v849 = vpop.f32.mrf.mxu0
  %v850 = vadd.f32 %v788, %v849
  %851 = vdwg.mxu0
  %v852 = vmax.f32 %v848, 0.0
  %v853 = vmax.f32 %v850, 0.0
  %v854 = vpack.c.bf16 %v853, %v852
  %v856 = vperm.slane %v785, 0
  %v874 = vunpack.c.l.b16 %v767
  %v875 = vunpack.c.l.b16 %v768
  %v876 = vunpack.c.l.b16 %v769
  %v877 = vunpack.c.l.b16 %v770
  %v878 = vunpack.c.l.b16 %v771
  %v879 = vunpack.c.l.b16 %v772
  %v880 = vunpack.c.l.b16 %v773
  %v881 = vunpack.c.l.b16 %v774
  %v882 = vunpack.c.l.b16 %v775
  %v883 = vunpack.c.l.b16 %v776
  %v884 = vunpack.c.l.b16 %v777
  %v885 = vunpack.c.l.b16 %v778
  %v886 = vunpack.c.l.b16 %v779
  %v887 = vunpack.c.l.b16 %v780
  %v888 = vunpack.c.l.b16 %v781
  %v889 = vunpack.c.l.b16 %v782
  %v890 = vpack.c.b16 %v875, %v874
  %v891 = vpack.c.b16 %v877, %v876
  %v892 = vpack.c.b16 %v879, %v878
  %v893 = vpack.c.b16 %v881, %v880
  %v894 = vpack.c.b16 %v883, %v882
  %v895 = vpack.c.b16 %v885, %v884
  %v896 = vpack.c.b16 %v887, %v886
  %v897 = vpack.c.b16 %v889, %v888
  %906 = vmatpush.bf16.msra.mxu0 %v897
  %907 = vmatpush.bf16.msra.mxu0 %v896
  %908 = vmatpush.bf16.msra.mxu0 %v895
  %909 = vmatpush.bf16.msra.mxu0 %v894
  %910 = vmatpush.bf16.msra.mxu0 %v893
  %911 = vmatpush.bf16.msra.mxu0 %v892
  %912 = vmatpush.bf16.msra.mxu0 %v891
  %913 = vmatpush.bf16.msra.mxu0 %v890
  %914 = vmatmul.bf16.gmra.mxu0 %v854
  %v915 = vpop.f32.mrf.mxu0
  %v916 = vadd.f32 %v856, %v915
  %v917 = vpop.f32.mrf.mxu0
  %v918 = vadd.f32 %v856, %v917
  %919 = vdwg.mxu0
  %v920 = vmax.f32 %v916, 0.0
  %v921 = vmax.f32 %v918, 0.0
  %v922 = vadd.f32 %v920, %v748
  %v923 = vadd.f32 %v921, %v749
  %s924 = scalar_lea.vmem %s14, 128
  %v925 = vld [vmem:[%s924] sm:$0xf]
  %v926 = vld [vmem:[%s924 + $0x4] sm:$0xf]
  %v927 = vld [vmem:[%s924 + $0x8] sm:$0xf]
  %v928 = vld [vmem:[%s924 + $0xc] sm:$0xf]
  %v929 = vld [vmem:[%s924 + $0x10] sm:$0xf]
  %v930 = vld [vmem:[%s924 + $0x14] sm:$0xf]
  %v931 = vld [vmem:[%s924 + $0x18] sm:$0xf]
  %v932 = vld [vmem:[%s924 + $0x1c] sm:$0xf]
  %v933 = vld [vmem:[%s924 + $0x20] sm:$0xf]
  %v934 = vld [vmem:[%s924 + $0x24] sm:$0xf]
  %v935 = vld [vmem:[%s924 + $0x28] sm:$0xf]
  %v936 = vld [vmem:[%s924 + $0x2c] sm:$0xf]
  %v937 = vld [vmem:[%s924 + $0x30] sm:$0xf]
  %v938 = vld [vmem:[%s924 + $0x34] sm:$0xf]
  %v939 = vld [vmem:[%s924 + $0x38] sm:$0xf]
  %v940 = vld [vmem:[%s924 + $0x3c] sm:$0xf]
  %s941 = scalar_lea.vmem %s14, 192
  %v942 = vld [vmem:[%s941] sm:$0xf]
  %v943 = vld [vmem:[%s941 + $0x4] sm:$0xf]
  %v944 = vld [vmem:[%s941 + $0x8] sm:$0xf]
  %v945 = vld [vmem:[%s941 + $0xc] sm:$0xf]
  %v946 = vld [vmem:[%s941 + $0x10] sm:$0xf]
  %v947 = vld [vmem:[%s941 + $0x14] sm:$0xf]
  %v948 = vld [vmem:[%s941 + $0x18] sm:$0xf]
  %v949 = vld [vmem:[%s941 + $0x1c] sm:$0xf]
  %v950 = vld [vmem:[%s941 + $0x20] sm:$0xf]
  %v951 = vld [vmem:[%s941 + $0x24] sm:$0xf]
  %v952 = vld [vmem:[%s941 + $0x28] sm:$0xf]
  %v953 = vld [vmem:[%s941 + $0x2c] sm:$0xf]
  %v954 = vld [vmem:[%s941 + $0x30] sm:$0xf]
  %v955 = vld [vmem:[%s941 + $0x34] sm:$0xf]
  %v956 = vld [vmem:[%s941 + $0x38] sm:$0xf]
  %v957 = vld [vmem:[%s941 + $0x3c] sm:$0xf]
  %s958 = scalar_lea.vmem %s15, 2
  %v959 = vld [vmem:[%s958] sm:$0x1]
  %s960 = scalar_lea.vmem %s15, 3
  %v961 = vld [vmem:[%s960] sm:$0x1]
  %v962 = vpack.c.bf16 %v923, %v922
  %v964 = vperm.slane %v959, 0
  %v982 = vunpack.c.l.b16 %v925
  %v983 = vunpack.c.l.b16 %v926
  %v984 = vunpack.c.l.b16 %v927
  %v985 = vunpack.c.l.b16 %v928
  %v986 = vunpack.c.l.b16 %v929
  %v987 = vunpack.c.l.b16 %v930
  %v988 = vunpack.c.l.b16 %v931
  %v989 = vunpack.c.l.b16 %v932
  %v990 = vunpack.c.l.b16 %v933
  %v991 = vunpack.c.l.b16 %v934
  %v992 = vunpack.c.l.b16 %v935
  %v993 = vunpack.c.l.b16 %v936
  %v994 = vunpack.c.l.b16 %v937
  %v995 = vunpack.c.l.b16 %v938
  %v996 = vunpack.c.l.b16 %v939
  %v997 = vunpack.c.l.b16 %v940
  %v998 = vpack.c.b16 %v983, %v982
  %v999 = vpack.c.b16 %v985, %v984
  %v1000 = vpack.c.b16 %v987, %v986
  %v1001 = vpack.c.b16 %v989, %v988
  %v1002 = vpack.c.b16 %v991, %v990
  %v1003 = vpack.c.b16 %v993, %v992
  %v1004 = vpack.c.b16 %v995, %v994
  %v1005 = vpack.c.b16 %v997, %v996
  %1014 = vmatpush.bf16.msra.mxu0 %v1005
  %1015 = vmatpush.bf16.msra.mxu0 %v1004
  %1016 = vmatpush.bf16.msra.mxu0 %v1003
  %1017 = vmatpush.bf16.msra.mxu0 %v1002
  %1018 = vmatpush.bf16.msra.mxu0 %v1001
  %1019 = vmatpush.bf16.msra.mxu0 %v1000
  %1020 = vmatpush.bf16.msra.mxu0 %v999
  %1021 = vmatpush.bf16.msra.mxu0 %v998
  %1022 = vmatmul.bf16.gmra.mxu0 %v962
  %v1023 = vpop.f32.mrf.mxu0
  %v1024 = vadd.f32 %v964, %v1023
  %v1025 = vpop.f32.mrf.mxu0
  %v1026 = vadd.f32 %v964, %v1025
  %1027 = vdwg.mxu0
  %v1028 = vmax.f32 %v1024, 0.0
  %v1029 = vmax.f32 %v1026, 0.0
  %v1030 = vpack.c.bf16 %v1029, %v1028
  %v1032 = vperm.slane %v961, 0
  %v1050 = vunpack.c.l.b16 %v942
  %v1051 = vunpack.c.l.b16 %v943
  %v1052 = vunpack.c.l.b16 %v944
  %v1053 = vunpack.c.l.b16 %v945
  %v1054 = vunpack.c.l.b16 %v946
  %v1055 = vunpack.c.l.b16 %v947
  %v1056 = vunpack.c.l.b16 %v948
  %v1057 = vunpack.c.l.b16 %v949
  %v1058 = vunpack.c.l.b16 %v950
  %v1059 = vunpack.c.l.b16 %v951
  %v1060 = vunpack.c.l.b16 %v952
  %v1061 = vunpack.c.l.b16 %v953
  %v1062 = vunpack.c.l.b16 %v954
  %v1063 = vunpack.c.l.b16 %v955
  %v1064 = vunpack.c.l.b16 %v956
  %v1065 = vunpack.c.l.b16 %v957
  %v1066 = vpack.c.b16 %v1051, %v1050
  %v1067 = vpack.c.b16 %v1053, %v1052
  %v1068 = vpack.c.b16 %v1055, %v1054
  %v1069 = vpack.c.b16 %v1057, %v1056
  %v1070 = vpack.c.b16 %v1059, %v1058
  %v1071 = vpack.c.b16 %v1061, %v1060
  %v1072 = vpack.c.b16 %v1063, %v1062
  %v1073 = vpack.c.b16 %v1065, %v1064
  %1082 = vmatpush.bf16.msra.mxu0 %v1073
  %1083 = vmatpush.bf16.msra.mxu0 %v1072
  %1084 = vmatpush.bf16.msra.mxu0 %v1071
  %1085 = vmatpush.bf16.msra.mxu0 %v1070
  %1086 = vmatpush.bf16.msra.mxu0 %v1069
  %1087 = vmatpush.bf16.msra.mxu0 %v1068
  %1088 = vmatpush.bf16.msra.mxu0 %v1067
  %1089 = vmatpush.bf16.msra.mxu0 %v1066
  %1090 = vmatmul.bf16.gmra.mxu0 %v1030
  %v1091 = vpop.f32.mrf.mxu0
  %v1092 = vadd.f32 %v1032, %v1091
  %v1093 = vpop.f32.mrf.mxu0
  %v1094 = vadd.f32 %v1032, %v1093
  %1095 = vdwg.mxu0
  %v1096 = vmax.f32 %v1092, 0.0
  %v1097 = vmax.f32 %v1094, 0.0
  %v1098 = vadd.f32 %v1096, %v922
  %v1099 = vadd.f32 %v1097, %v923
  %v1100 = vpack.c.bf16 %v1099, %v1098
  %v1101 = vld [vmem:[%s16] sm:$0xf]
  %v1102 = vld [vmem:[%s16 + $0x4] sm:$0xf]
  %v1103 = vld [vmem:[%s16 + $0x8] sm:$0xf]
  %v1104 = vld [vmem:[%s16 + $0xc] sm:$0xf]
  %v1105 = vld [vmem:[%s16 + $0x10] sm:$0xf]
  %v1106 = vld [vmem:[%s16 + $0x14] sm:$0xf]
  %v1107 = vld [vmem:[%s16 + $0x18] sm:$0xf]
  %v1108 = vld [vmem:[%s16 + $0x1c] sm:$0xf]
  %v1109 = vld [vmem:[%s16 + $0x20] sm:$0xf]
  %v1110 = vld [vmem:[%s16 + $0x24] sm:$0xf]
  %v1111 = vld [vmem:[%s16 + $0x28] sm:$0xf]
  %v1112 = vld [vmem:[%s16 + $0x2c] sm:$0xf]
  %v1113 = vld [vmem:[%s16 + $0x30] sm:$0xf]
  %v1114 = vld [vmem:[%s16 + $0x34] sm:$0xf]
  %v1115 = vld [vmem:[%s16 + $0x38] sm:$0xf]
  %v1116 = vld [vmem:[%s16 + $0x3c] sm:$0xf]
  %v1117 = vld [vmem:[%s17] sm:$0x1]
  %v1119 = vperm.slane %v1117, 0
  %v1137 = vunpack.c.l.b16 %v1101
  %v1138 = vunpack.c.l.b16 %v1102
  %v1139 = vunpack.c.l.b16 %v1103
  %v1140 = vunpack.c.l.b16 %v1104
  %v1141 = vunpack.c.l.b16 %v1105
  %v1142 = vunpack.c.l.b16 %v1106
  %v1143 = vunpack.c.l.b16 %v1107
  %v1144 = vunpack.c.l.b16 %v1108
  %v1145 = vunpack.c.l.b16 %v1109
  %v1146 = vunpack.c.l.b16 %v1110
  %v1147 = vunpack.c.l.b16 %v1111
  %v1148 = vunpack.c.l.b16 %v1112
  %v1149 = vunpack.c.l.b16 %v1113
  %v1150 = vunpack.c.l.b16 %v1114
  %v1151 = vunpack.c.l.b16 %v1115
  %v1152 = vunpack.c.l.b16 %v1116
  %v1153 = vpack.c.b16 %v1138, %v1137
  %v1154 = vpack.c.b16 %v1140, %v1139
  %v1155 = vpack.c.b16 %v1142, %v1141
  %v1156 = vpack.c.b16 %v1144, %v1143
  %v1157 = vpack.c.b16 %v1146, %v1145
  %v1158 = vpack.c.b16 %v1148, %v1147
  %v1159 = vpack.c.b16 %v1150, %v1149
  %v1160 = vpack.c.b16 %v1152, %v1151
  %1169 = vmatpush.bf16.msra.mxu0 %v1160
  %1170 = vmatpush.bf16.msra.mxu0 %v1159
  %1171 = vmatpush.bf16.msra.mxu0 %v1158
  %1172 = vmatpush.bf16.msra.mxu0 %v1157
  %1173 = vmatpush.bf16.msra.mxu0 %v1156
  %1174 = vmatpush.bf16.msra.mxu0 %v1155
  %1175 = vmatpush.bf16.msra.mxu0 %v1154
  %1176 = vmatpush.bf16.msra.mxu0 %v1153
  %1177 = vmatmul.bf16.gmra.mxu0 %v1100
  %v1178 = vpop.f32.mrf.mxu0
  %v1179 = vadd.f32 %v1119, %v1178
  %v1180 = vpop.f32.mrf.mxu0
  %v1181 = vadd.f32 %v1119, %v1180
  %1182 = vdwg.mxu0
  %1183 = vmax.xlane.f32.xlu0 %v1179
  %v1184 = vpop.xlane.xlu0 %1183
  %1185 = vmax.xlane.f32.xlu0 %v1181
  %v1186 = vpop.xlane.xlu0 %1185
  %v1187 = vsub.f32 %v1179, %v1184
  %v1188 = vsub.f32 %v1181, %v1186
  %v1189 = vmul.f32 %v1187, 1.442695
  %v1190 = vpow.pop %v1189
  %v1191 = vmul.f32 %v1188, 1.442695
  %v1192 = vpow.pop %v1191
  %1193 = vadd.xlane.f32.xlu0 %v1190
  %v1194 = vpop.xlane.xlu0 %1193
  %1195 = vadd.xlane.f32.xlu0 %v1192
  %v1196 = vpop.xlane.xlu0 %1195
  %v1197 = vlog2.pop %v1194
  %v1198 = vmul.f32 %v1197, 0.6931472
  %v1199 = vlog2.pop %v1196
  %v1200 = vmul.f32 %v1199, 0.6931472
  %v1201 = vsub.f32 %v1187, %v1198
  %v1202 = vsub.f32 %v1188, %v1200
  %1203 = vst [vmem:[%s22] sm:$0xff] %v1201
  %1204 = vst [vmem:[%s22 + $0x8] sm:$0xff] %v1202
  %v1205 = vld [vmem:[%s19] sm:$0xff]
  %v1206 = vld [vmem:[%s19 + $0x8] sm:$0xff]
  %v1207 = vld [vmem:[%s19 + $0x10] sm:$0xff]
  %v1208 = vld [vmem:[%s19 + $0x18] sm:$0xff]
  %v1213 = vunpack.c.l.b16 %v1205
  %v1214 = vunpack.c.h.b16 %v1205
  %v1215 = vunpack.c.l.b16 %v1206
  %v1216 = vunpack.c.h.b16 %v1206
  %v1217 = vunpack.c.l.b16 %v1207
  %v1218 = vunpack.c.h.b16 %v1207
  %v1219 = vunpack.c.l.b16 %v1208
  %v1220 = vunpack.c.h.b16 %v1208
  %v1221 = vpack.c.b16 %v1215, %v1213
  %v1222 = vpack.c.b16 %v1216, %v1214
  %v1223 = vpack.c.b16 %v1219, %v1217
  %v1224 = vpack.c.b16 %v1220, %v1218
  %1229 = vmatpush.bf16.msra.mxu0 0
  %1230 = vmatpush.bf16.msra.mxu0 0
  %1231 = vmatpush.bf16.msra.mxu0 0
  %1232 = vmatpush.bf16.msra.mxu0 0
  %1233 = vmatpush.bf16.msra.mxu0 0
  %1234 = vmatpush.bf16.msra.mxu0 0
  %1235 = vmatpush.bf16.msra.mxu0 %v1223
  %1236 = vmatpush.bf16.msra.mxu0 %v1221
  %1237 = vmatmul.bf16.gmra.mxu0 %v172
  %v1238 = vpop.f32.mrf.mxu0
  %v1239 = vadd.f32 0.0, %v1238
  %v1240 = vpop.f32.mrf.mxu0
  %1241 = vdwg.mxu0
  %1242 = vmatpush.bf16.msra.mxu0 0
  %1243 = vmatpush.bf16.msra.mxu0 0
  %1244 = vmatpush.bf16.msra.mxu0 0
  %1245 = vmatpush.bf16.msra.mxu0 0
  %1246 = vmatpush.bf16.msra.mxu0 0
  %1247 = vmatpush.bf16.msra.mxu0 0
  %1248 = vmatpush.bf16.msra.mxu0 %v1224
  %1249 = vmatpush.bf16.msra.mxu0 %v1222
  %1250 = vmatmul.bf16.gmra.mxu0 %v172
  %v1251 = vpop.f32.mrf.mxu0
  %v1252 = vadd.f32 0.0, %v1251
  %v1253 = vpop.f32.mrf.mxu0
  %1254 = vdwg.mxu0
  %v1255 = vld [vmem:[%s3] sm:$0xff]
  %v1256 = vpack.c.bf16 %v1255, %v1255
  %v1257 = vld [vmem:[%s18] sm:$0xff]
  %v1258 = vld [vmem:[%s18 + $0x8] sm:$0xff]
  %v1259 = vld [vmem:[%s18 + $0x10] sm:$0xff]
  %v1260 = vld [vmem:[%s18 + $0x18] sm:$0xff]
  %v1261 = vld [vmem:[%s18 + $0x20] sm:$0xff]
  %v1262 = vld [vmem:[%s18 + $0x28] sm:$0xff]
  %v1263 = vld [vmem:[%s18 + $0x30] sm:$0xff]
  %v1264 = vld [vmem:[%s18 + $0x38] sm:$0xff]
  %v1265 = vld [vmem:[%s18 + $0x40] sm:$0xff]
  %v1266 = vld [vmem:[%s18 + $0x48] sm:$0xff]
  %v1267 = vld [vmem:[%s18 + $0x50] sm:$0xff]
  %v1268 = vld [vmem:[%s18 + $0x58] sm:$0xff]
  %v1269 = vld [vmem:[%s18 + $0x60] sm:$0xff]
  %v1270 = vld [vmem:[%s18 + $0x68] sm:$0xff]
  %v1271 = vld [vmem:[%s18 + $0x70] sm:$0xff]
  %v1272 = vld [vmem:[%s18 + $0x78] sm:$0xff]
  %v1289 = vunpack.c.l.b16 %v1257
  %v1290 = vunpack.c.h.b16 %v1257
  %v1291 = vunpack.c.l.b16 %v1258
  %v1292 = vunpack.c.h.b16 %v1258
  %v1293 = vunpack.c.l.b16 %v1259
  %v1294 = vunpack.c.h.b16 %v1259
  %v1295 = vunpack.c.l.b16 %v1260
  %v1296 = vunpack.c.h.b16 %v1260
  %v1297 = vunpack.c.l.b16 %v1261
  %v1298 = vunpack.c.h.b16 %v1261
  %v1299 = vunpack.c.l.b16 %v1262
  %v1300 = vunpack.c.h.b16 %v1262
  %v1301 = vunpack.c.l.b16 %v1263
  %v1302 = vunpack.c.h.b16 %v1263
  %v1303 = vunpack.c.l.b16 %v1264
  %v1304 = vunpack.c.h.b16 %v1264
  %v1305 = vunpack.c.l.b16 %v1265
  %v1306 = vunpack.c.h.b16 %v1265
  %v1307 = vunpack.c.l.b16 %v1266
  %v1308 = vunpack.c.h.b16 %v1266
  %v1309 = vunpack.c.l.b16 %v1267
  %v1310 = vunpack.c.h.b16 %v1267
  %v1311 = vunpack.c.l.b16 %v1268
  %v1312 = vunpack.c.h.b16 %v1268
  %v1313 = vunpack.c.l.b16 %v1269
  %v1314 = vunpack.c.h.b16 %v1269
  %v1315 = vunpack.c.l.b16 %v1270
  %v1316 = vunpack.c.h.b16 %v1270
  %v1317 = vunpack.c.l.b16 %v1271
  %v1318 = vunpack.c.h.b16 %v1271
  %v1319 = vunpack.c.l.b16 %v1272
  %v1320 = vunpack.c.h.b16 %v1272
  %v1321 = vpack.c.b16 %v1291, %v1289
  %v1322 = vpack.c.b16 %v1292, %v1290
  %v1323 = vpack.c.b16 %v1295, %v1293
  %v1324 = vpack.c.b16 %v1296, %v1294
  %v1325 = vpack.c.b16 %v1299, %v1297
  %v1326 = vpack.c.b16 %v1300, %v1298
  %v1327 = vpack.c.b16 %v1303, %v1301
  %v1328 = vpack.c.b16 %v1304, %v1302
  %v1329 = vpack.c.b16 %v1307, %v1305
  %v1330 = vpack.c.b16 %v1308, %v1306
  %v1331 = vpack.c.b16 %v1311, %v1309
  %v1332 = vpack.c.b16 %v1312, %v1310
  %v1333 = vpack.c.b16 %v1315, %v1313
  %v1334 = vpack.c.b16 %v1316, %v1314
  %v1335 = vpack.c.b16 %v1319, %v1317
  %v1336 = vpack.c.b16 %v1320, %v1318
  %1353 = vmatpush.bf16.msra.mxu0 %v1335
  %1354 = vmatpush.bf16.msra.mxu0 %v1333
  %1355 = vmatpush.bf16.msra.mxu0 %v1331
  %1356 = vmatpush.bf16.msra.mxu0 %v1329
  %1357 = vmatpush.bf16.msra.mxu0 %v1327
  %1358 = vmatpush.bf16.msra.mxu0 %v1325
  %1359 = vmatpush.bf16.msra.mxu0 %v1323
  %1360 = vmatpush.bf16.msra.mxu0 %v1321
  %1361 = vmatmul.bf16.gmra.mxu0 %v1256
  %v1362 = vpop.f32.mrf.mxu0
  %v1363 = vadd.f32 0.0, %v1362
  %v1364 = vpop.f32.mrf.mxu0
  %1365 = vdwg.mxu0
  %1366 = vmatpush.bf16.msra.mxu0 %v1336
  %1367 = vmatpush.bf16.msra.mxu0 %v1334
  %1368 = vmatpush.bf16.msra.mxu0 %v1332
  %1369 = vmatpush.bf16.msra.mxu0 %v1330
  %1370 = vmatpush.bf16.msra.mxu0 %v1328
  %1371 = vmatpush.bf16.msra.mxu0 %v1326
  %1372 = vmatpush.bf16.msra.mxu0 %v1324
  %1373 = vmatpush.bf16.msra.mxu0 %v1322
  %1374 = vmatmul.bf16.gmra.mxu0 %v1256
  %v1375 = vpop.f32.mrf.mxu0
  %v1376 = vadd.f32 0.0, %v1375
  %v1377 = vpop.f32.mrf.mxu0
  %1378 = vdwg.mxu0
  %v1381 = vrot.slane %v1252, 7
  %vm1382 = vcmask 1040384
  %v1383 = vsel %vm1382, %v1239, %v1381
  %vm1384 = vcmask 1041409
  %v1385 = vsel %vm1384, %v1239, %v1381
  %v1386 = vrot.slane %v1385, 1
  %v1387 = vperm.slane %v1383, 0
  %v1388 = vperm.slane %v1383, 1
  %v1389 = vperm.slane %v1386, 0
  %v1390 = vperm.slane %v1386, 1
  %v1395 = vadd.f32 %v1387, %v1363
  %v1396 = vadd.f32 %v1388, %v1376
  %v1397 = vadd.f32 %v1389, %v1363
  %v1398 = vadd.f32 %v1390, %v1376
  %v1399 = vld [vmem:[%s20] sm:$0x3]
  %v1401 = vperm.slane %v1399, 0
  %v1402 = vperm.slane %v1399, 1
  %v1405 = vadd.f32 %v1395, %v1401
  %v1406 = vadd.f32 %v1396, %v1402
  %v1407 = vadd.f32 %v1397, %v1401
  %v1408 = vadd.f32 %v1398, %v1402
  %v1409 = vmax.f32 %v1405, %v1406
  %1410 = vmax.xlane.f32.xlu0 %v1409
  %v1411 = vpop.xlane.xlu0 %1410
  %v1412 = vmax.f32 %v1407, %v1408
  %1413 = vmax.xlane.f32.xlu0 %v1412
  %v1414 = vpop.xlane.xlu0 %1413
  %v1415 = vsub.f32 %v1405, %v1411
  %v1416 = vsub.f32 %v1406, %v1411
  %v1417 = vsub.f32 %v1407, %v1414
  %v1418 = vsub.f32 %v1408, %v1414
  %v1419 = vmul.f32 %v1415, 1.442695
  %v1420 = vpow.pop %v1419
  %v1421 = vmul.f32 %v1416, 1.442695
  %v1422 = vpow.pop %v1421
  %v1423 = vmul.f32 %v1417, 1.442695
  %v1424 = vpow.pop %v1423
  %v1425 = vmul.f32 %v1418, 1.442695
  %v1426 = vpow.pop %v1425
  %v1427 = vadd.f32 %v1420, %v1422
  %1428 = vadd.xlane.f32.xlu0 %v1427
  %v1429 = vpop.xlane.xlu0 %1428
  %v1430 = vadd.f32 %v1424, %v1426
  %1431 = vadd.xlane.f32.xlu0 %v1430
  %v1432 = vpop.xlane.xlu0 %1431
  %v1433 = vlog2.pop %v1429
  %v1434 = vmul.f32 %v1433, 0.6931472
  %v1435 = vlog2.pop %v1432
  %v1436 = vmul.f32 %v1435, 0.6931472
  %v1437 = vsub.f32 %v1415, %v1434
  %v1438 = vsub.f32 %v1416, %v1434
  %v1439 = vsub.f32 %v1417, %v1436
  %v1440 = vsub.f32 %v1418, %v1436
  %1441 = vst [vmem:[%s23] sm:$0xff] %v1437
  %1442 = vst [vmem:[%s23 + $0x8] sm:$0xff] %v1438
  %1443 = vst [vmem:[%s23 + $0x10] sm:$0xff] %v1439
  %1444 = vst [vmem:[%s23 + $0x18] sm:$0xff] %v1440
  // Predicated region
  $region86: #{_lambda_.1} parent=0 // pred_check
    _
  $region87: #{_lambda_.1} parent=0 // pred_check_branch
    %1446 = sbr.rel (0) target = $region89
  $region88: #{_lambda_.1} parent=0 // pred_region
    _
  $region89: #{_lambda_.1} parent=0 // pred_fallthru
    _
  // Predicated region
  $region90: #{_lambda_.1} parent=0 // pred_check
    _
  $region91: #{_lambda_.1} parent=0 // pred_check_branch
    %1448 = sbr.rel (0) target = $region93
  $region92: #{_lambda_.1} parent=0 // pred_region
    _
  $region93: #{_lambda_.1} parent=0 // pred_fallthru
    _
  // Predicated region
  $region94: #{_lambda_.1} parent=0 // pred_check
    _
  $region95: #{_lambda_.1} parent=0 // pred_check_branch
    %1450 = sbr.rel (0) target = $region97
  $region96: #{_lambda_.1} parent=0 // pred_region
    _
  $region97: #{_lambda_.1} parent=0 // pred_fallthru
    _
  // Predicated region
  $region98: #{_lambda_.1} parent=0 // pred_check
    _
  $region99: #{_lambda_.1} parent=0 // pred_check_branch
    %1452 = sbr.rel (0) target = $region101
  $region100: #{_lambda_.1} parent=0 // pred_region
    _
  $region101: #{_lambda_.1} parent=0 // pred_fallthru
    _
  // Predicated region
  $region102: #{_lambda_.1} parent=0 // pred_check
    _
  $region103: #{_lambda_.1} parent=0 // pred_check_branch
    %1454 = sbr.rel (0) target = $region105
  $region104: #{_lambda_.1} parent=0 // pred_region
    _
  $region105: #{_lambda_.1} parent=0 // pred_fallthru
    _
  // Predicated region
  $region106: #{_lambda_.1} parent=0 // pred_check
    _
  $region107: #{_lambda_.1} parent=0 // pred_check_branch
    %1456 = sbr.rel (0) target = $region109
  $region108: #{_lambda_.1} parent=0 // pred_region
    _
  $region109: #{_lambda_.1} parent=0 // pred_fallthru
    _

</llo_original>
